<compile_context>
chip_gen: v7x
topology: tpu7x:2x2x1
jax: 0.10.0
libtpu: 0.0.40
codegen_flags: <defaults>
</compile_context>

<pallas_src>
import functools
import math

import jax
import jax.numpy as jnp
from jax import lax
from jax.experimental import pallas as pl
from jax.experimental.pallas import tpu as pltpu

# Explicit scoped-VMEM budget: well above the 32 MiB default, with headroom
# under v7x's 64 MiB physical VMEM.
_VMEM_LIMIT = 48 * 1024 * 1024


def _cdiv(a, b):
    return (a + b - 1) // b


def _round_up(x, m):
    return _cdiv(x, m) * m


def _pick_tn(n):
    np128 = _round_up(n, 128)
    return 256 if np128 % 256 == 0 else 128


def _pick_tm(m, cap=512):
    # >=2 M tiles whenever m >= 16 so both v7x TensorCores get work; cap keeps
    # per-step buffers comfortably inside VMEM while amortizing grid overhead.
    return min(cap, max(8, _round_up(_cdiv(m, 2), 8)))


# ----------------------------------------------------------------------------
# Kernel 1: fused multi-term matmul  (sum_i A_i @ W_i) + bias [+ residual][ReLU]
# Used for every 1x1 convolution.  K is small (<= 768): no reduction grid axis.
# ----------------------------------------------------------------------------
def _mm_kernel(*refs, n_terms, has_res, relu):
    b_ref = refs[2 * n_terms]
    o_ref = refs[-1]
    acc = jnp.dot(refs[0][...], refs[1][...], preferred_element_type=jnp.float32)
    for t in range(1, n_terms):
        acc = acc + jnp.dot(refs[2 * t][...], refs[2 * t + 1][...],
                            preferred_element_type=jnp.float32)
    acc = acc + b_ref[...].astype(jnp.float32)
    if has_res:
        acc = acc + refs[2 * n_terms + 1][...].astype(jnp.float32)
    if relu:
        acc = jnp.maximum(acc, 0.0)
    o_ref[...] = acc.astype(o_ref.dtype)


def matmul_fused(terms, bias, *, residual=None, relu=False,
                 out_dtype=jnp.bfloat16):
    """out = sum_i terms[i][0] @ terms[i][1] + bias (+ residual), optional ReLU."""
    M = terms[0][0].shape[0]
    N = terms[0][1].shape[1]
    TM = _pick_tm(M, cap=512)
    Mp = _round_up(M, TM)
    TN = _pick_tn(N)
    Np = _round_up(N, TN)

    ins, in_specs = [], []
    total_k = 0
    for a, w in terms:
        K = a.shape[1]
        total_k += K
        a = a.astype(jnp.bfloat16)
        if Mp != M:
            a = jnp.pad(a, ((0, Mp - M), (0, 0)))
        ins.append(a)
        in_specs.append(pl.BlockSpec((TM, K), lambda i, j: (i, 0)))
        ins.append(jnp.pad(w.astype(jnp.bfloat16), ((0, 0), (0, Np - N))))
        in_specs.append(pl.BlockSpec((K, TN), lambda i, j: (0, j)))
    ins.append(jnp.pad(bias.reshape(1, N).astype(jnp.float32),
                       ((0, 0), (0, Np - N))))
    in_specs.append(pl.BlockSpec((1, TN), lambda i, j: (0, j)))
    has_res = residual is not None
    if has_res:
        r = residual.astype(jnp.float32)
        ins.append(jnp.pad(r, ((0, Mp - M), (0, Np - N))))
        in_specs.append(pl.BlockSpec((TM, TN), lambda i, j: (i, j)))

    flops = 2 * Mp * Np * total_k
    bytes_accessed = int(sum(int(x.size) * x.dtype.itemsize for x in ins)
                         + Mp * Np * jnp.dtype(out_dtype).itemsize)

    out = pl.pallas_call(
        functools.partial(_mm_kernel, n_terms=len(terms),
                          has_res=has_res, relu=relu),
        out_shape=jax.ShapeDtypeStruct((Mp, Np), out_dtype),
        grid=(Mp // TM, Np // TN),
        in_specs=in_specs,
        out_specs=pl.BlockSpec((TM, TN), lambda i, j: (i, j)),
        compiler_params=pltpu.CompilerParams(
            dimension_semantics=("parallel", "parallel"),
            vmem_limit_bytes=_VMEM_LIMIT),
        cost_estimate=pl.CostEstimate(flops=flops, transcendentals=0,
                                      bytes_accessed=bytes_accessed),
    )(*ins)
    return out[:M, :N]


def conv1x1(terms, bias, *, residual=None, relu=False, out_dtype=jnp.bfloat16):
    """1x1 conv over NHWC inputs as a fused flat matmul."""
    B, H, W, _ = terms[0][0].shape
    flat_terms = [(x.reshape(B * H * W, x.shape[-1]), w) for x, w in terms]
    res = None
    if residual is not None:
        res = residual.reshape(B * H * W, residual.shape[-1])
    y = matmul_fused(flat_terms, bias, residual=res, relu=relu,
                     out_dtype=out_dtype)
    return y.reshape(B, H, W, y.shape[-1])


# ----------------------------------------------------------------------------
# Kernel 2: fused 3x3 convolution (stride 1 or 2), halo-tiled over M.
#   - host builds a column-shifted channel concat (K = 3*Cin per tap, 3 taps),
#     or a K=9*Cin im2col for the tiny-Cin stem (1 tap).
#   - grid = (nM, nN), both parallel; each tile reads a (TM, Kc) "current"
#     block and a (TM, Kc) "next" block (halo source), accumulates taps into an
#     f32 VMEM scratch, then applies bias/ReLU and casts.
#   - all tap row offsets are multiples of 8 (row stride padded), so every
#     pl.ds start is sublane-aligned.
# ----------------------------------------------------------------------------
def _conv_tap_kernel(*refs, n_phase, has_next, taps, relu, tm):
    per = 2 if has_next else 1
    acts = refs[:n_phase * per]
    w_ref, b_ref, o_ref, acc_ref = refs[n_phase * per:]
    cur = [acts[i * per] for i in range(n_phase)]
    nxt = [acts[i * per + 1] if has_next else None for i in range(n_phase)]

    for t, (p, off) in enumerate(taps):
        wt = w_ref[t]                                   # (Kc, TN)
        if t == 0:
            # taps[0] always has offset 0 -> fully overwrites the accumulator.
            acc_ref[...] = jnp.dot(cur[p][...], wt,
                                   preferred_element_type=jnp.float32)
        elif off == 0:
            acc_ref[...] += jnp.dot(cur[p][...], wt,
                                    preferred_element_type=jnp.float32)
        else:
            m0 = tm - off                               # static, multiple of 8
            if m0 > 0:
                acc_ref[pl.ds(0, m0), :] += jnp.dot(
                    cur[p][pl.ds(off, m0), :], wt,
                    preferred_element_type=jnp.float32)
            acc_ref[pl.ds(m0, off), :] += jnp.dot(
                nxt[p][pl.ds(0, off), :], wt,
                preferred_element_type=jnp.float32)

    out = acc_ref[...] + b_ref[...].astype(jnp.float32)
    if relu:
        out = jnp.maximum(out, 0.0)
    o_ref[...] = out.astype(o_ref.dtype)


def conv3x3(x, w9, b, *, stride=1, relu=False, out_dtype=jnp.bfloat16):
    """3x3 'same' conv (padding=1).  w9: (9, Cin, Cout) [k = 3*di + dj], b: (Cout,)."""
    B, H, W, C = x.shape
    Cout = w9.shape[-1]
    x = x.astype(jnp.bfloat16)

    if stride == 1:
        Ho, Wo = H, W
        Wrow = _round_up(W, 8)
        xp = jnp.pad(x, ((0, 0), (1, 1), (1, 1 + Wrow - W), (0, 0)))
        # column-shifted concat: channels ordered [dj=0 | dj=1 | dj=2].
        xc = jnp.concatenate([xp[:, :, d:d + Wrow] for d in range(3)], axis=-1)
        phases = [xc]
        rows_img = H + 2
        taps = ((0, 0), (0, Wrow), (0, 2 * Wrow))
        w_taps = w9.reshape(3, 3, C, Cout).reshape(3, 3 * C, Cout)
        halo = 2 * Wrow
    elif stride == 2 and C <= 8:
        # Stem special case: full im2col -> one K = 9*Cin matmul.
        Ho, Wo = (H + 1) // 2, (W + 1) // 2
        xp = jnp.pad(x, ((0, 0), (1, 2 * Ho - H), (1, 2 * Wo - W), (0, 0)))
        cols = [xp[:, di:di + 2 * Ho:2, dj:dj + 2 * Wo:2, :]
                for di in range(3) for dj in range(3)]
        phases = [jnp.concatenate(cols, axis=-1)]        # (B, Ho, Wo, 9C)
        rows_img, Wrow = Ho, Wo
        taps = ((0, 0),)
        w_taps = w9.reshape(1, 9 * C, Cout)
        halo = 0
    elif stride == 2:
        Ho, Wo = (H + 1) // 2, (W + 1) // 2
        Wrow = _round_up(Wo, 8)
        xp = jnp.pad(x, ((0, 0), (1, 2 * Ho - H), (1, 2 * Wrow - W), (0, 0)))
        even = xp[:, :, 0:2 * Wrow:2]                    # padded cols 2*jo
        odd = xp[:, :, 1:2 * Wrow:2]                     # padded cols 2*jo+1
        even1 = xp[:, :, 2:2 * Wrow + 1:2]               # padded cols 2*jo+2
        xcg = jnp.concatenate([even, odd, even1], axis=-1)   # (B, 2Ho+1, Wrow, 3C)
        ph0 = xcg[:, 0::2]                               # even padded rows, Ho+1
        ph1 = jnp.pad(xcg[:, 1::2], ((0, 0), (0, 1), (0, 0), (0, 0)))  # odd rows
        phases = [ph0, ph1]
        rows_img = Ho + 1
        taps = ((0, 0), (1, 0), (0, Wrow))
        w_taps = w9.reshape(3, 3, C, Cout).reshape(3, 3 * C, Cout)
        halo = Wrow
    else:
        raise ValueError("only stride 1 or 2 supported")
    assert taps[0][1] == 0

    Kc = phases[0].shape[-1]
    Mv = B * rows_img * Wrow
    TM = max(halo, _pick_tm(Mv, cap=512))
    TM = _round_up(TM, 8)
    nM = _cdiv(Mv, TM)
    Mtot = (nM + 1) * TM                  # +1 block so the "next" (halo) block
    flats = [jnp.pad(p.reshape(Mv, Kc), ((0, Mtot - Mv), (0, 0)))  # always exists
             for p in phases]

    N = Cout
    TN = _pick_tn(N)
    Np = _round_up(N, TN)
    ntap = len(taps)
    w_p = jnp.pad(w_taps.astype(jnp.bfloat16), ((0, 0), (0, 0), (0, Np - N)))
    b_p = jnp.pad(b.reshape(1, N).astype(jnp.float32), ((0, 0), (0, Np - N)))
    has_next = halo > 0

    ins, in_specs = [], []
    for f in flats:
        ins.append(f)
        in_specs.append(pl.BlockSpec((TM, Kc), lambda m, n: (m, 0)))
        if has_next:
            ins.append(f)
            in_specs.append(pl.BlockSpec((TM, Kc), lambda m, n: (m + 1, 0)))
    ins += [w_p, b_p]
    # Weight/bias blocks are constant over the M axis; the auto pipeline keeps
    # them resident (only re-fetched when the N tile changes, nN <= 2).
    in_specs += [pl.BlockSpec((ntap, Kc, TN), lambda m, n: (0, 0, n)),
                 pl.BlockSpec((1, TN), lambda m, n: (0, n))]

    flops = 2 * (nM * TM) * Np * Kc * ntap
    bytes_accessed = int(len(flats) * (2 if has_next else 1) * Mtot * Kc * 2
                         + ntap * Kc * Np * 2 + Np * 4
                         + nM * TM * Np * jnp.dtype(out_dtype).itemsize)

    out = pl.pallas_call(
        functools.partial(_conv_tap_kernel, n_phase=len(phases),
                          has_next=has_next, taps=tuple(taps), relu=relu, tm=TM),
        out_shape=jax.ShapeDtypeStruct((nM * TM, Np), out_dtype),
        grid=(nM, Np // TN),
        in_specs=in_specs,
        out_specs=pl.BlockSpec((TM, TN), lambda m, n: (m, n)),
        scratch_shapes=[pltpu.VMEM((TM, TN), jnp.float32)],
        compiler_params=pltpu.CompilerParams(
            dimension_semantics=("parallel", "parallel"),
            vmem_limit_bytes=_VMEM_LIMIT),
        cost_estimate=pl.CostEstimate(flops=flops, transcendentals=0,
                                      bytes_accessed=bytes_accessed),
    )(*ins)

    y = out[:Mv].reshape(B, rows_img, Wrow, Np)[:, :Ho, :Wo, :N]
    return y


# ----------------------------------------------------------------------------
# Kernel 3: |A - B| elementwise in f32, lane-dense (reshaped to 128-wide rows).
# ----------------------------------------------------------------------------
def _absdiff_kernel(a_ref, b_ref, o_ref):
    o_ref[...] = jnp.abs(a_ref[...].astype(jnp.float32)
                         - b_ref[...].astype(jnp.float32)).astype(o_ref.dtype)


def abs_diff(a, b):
    orig_shape = a.shape
    size = int(a.size)
    if size % (8 * 128) == 0:
        a2 = a.reshape(size // 128, 128)
        b2 = b.reshape(size // 128, 128)
    else:
        a2 = a.reshape(-1, orig_shape[-1])
        b2 = b.reshape(-1, orig_shape[-1])
    M, C2 = a2.shape
    TM = min(1024, max(8, _round_up(_cdiv(M, 2), 8)))
    Mp = _round_up(M, TM)
    if Mp != M:
        a2 = jnp.pad(a2, ((0, Mp - M), (0, 0)))
        b2 = jnp.pad(b2, ((0, Mp - M), (0, 0)))
    out = pl.pallas_call(
        _absdiff_kernel,
        out_shape=jax.ShapeDtypeStruct((Mp, C2), a.dtype),
        grid=(Mp // TM,),
        in_specs=[pl.BlockSpec((TM, C2), lambda i: (i, 0)),
                  pl.BlockSpec((TM, C2), lambda i: (i, 0))],
        out_specs=pl.BlockSpec((TM, C2), lambda i: (i, 0)),
        compiler_params=pltpu.CompilerParams(
            dimension_semantics=("parallel",),
            vmem_limit_bytes=_VMEM_LIMIT),
    )(a2, b2)
    return out[:M].reshape(orig_shape)


def upsample(x, factor):
    """Nearest-neighbour upsample via a single broadcast + reshape."""
    B, H, W, C = x.shape
    y = jnp.broadcast_to(x[:, :, None, :, None, :], (B, H, factor, W, factor, C))
    return y.reshape(B, H * factor, W * factor, C)


# ----------------------------------------------------------------------------
# Parameters (deterministic synthetic init)
# ----------------------------------------------------------------------------
def _conv_params(key, k, cin, cout):
    fan_in = k * k * cin
    shape = (k * k, cin, cout) if k > 1 else (cin, cout)
    w = jax.random.normal(key, shape, jnp.float32) / math.sqrt(fan_in)
    return {"w": w, "b": jnp.zeros((cout,), jnp.float32)}


def init_cdnet_params(key, in_c, num_filters, n_class):
    del num_filters  # channel widths pinned by the FeatureFusion/DS_layer contract
    keys = iter(jax.random.split(key, 32))
    p = {}
    # backbone mynet3(in_c, f_c=64, output_stride=32): res1..res4 @ strides 4/8/16/32
    p["stem1"] = _conv_params(next(keys), 3, in_c, 64)
    p["stem2"] = _conv_params(next(keys), 3, 64, 64)
    p["layer2"] = _conv_params(next(keys), 3, 64, 128)
    p["layer3"] = _conv_params(next(keys), 3, 128, 256)
    p["layer4"] = _conv_params(next(keys), 3, 256, 512)
    # Decoder: top-down fusion producing features with channels [256, 128, 64]
    p["dec3"] = _conv_params(next(keys), 1, 512 + 256, 256)
    p["dec2"] = _conv_params(next(keys), 1, 256 + 128, 128)
    p["dec1"] = _conv_params(next(keys), 1, 128 + 64, 64)
    # FeatureFusion: concat(A,B) deep_c=[512,256,128] -> shallow_c=[256,128,64]
    p["ff0"] = _conv_params(next(keys), 1, 512, 256)
    p["ff1"] = _conv_params(next(keys), 1, 256, 128)
    p["ff2"] = _conv_params(next(keys), 1, 128, 64)
    # SegHead(nr_object_class)
    p["seg_di_a"] = _conv_params(next(keys), 3, 64, 32)
    p["seg_di_b"] = _conv_params(next(keys), 1, 32, n_class)
    p["seg1"] = _conv_params(next(keys), 1, 128, n_class)
    p["seg2"] = _conv_params(next(keys), 1, 256, n_class)
    # DS_layer(64,32,2,1,n_class) and DS_layer(128,32,2,1,n_class)
    p["ds1_a"] = _conv_params(next(keys), 3, 64, 32)
    p["ds1_b"] = _conv_params(next(keys), 3, 32, n_class)
    p["ds2_a"] = _conv_params(next(keys), 3, 128, 32)
    p["ds2_b"] = _conv_params(next(keys), 3, 32, n_class)
    return p


# ----------------------------------------------------------------------------
# CDNet forward (both Siamese branches batched through backbone + decoder)
# ----------------------------------------------------------------------------
def backbone(p, x):
    x = conv3x3(x, p["stem1"]["w"], p["stem1"]["b"], stride=2, relu=True)
    res1 = conv3x3(x, p["stem2"]["w"], p["stem2"]["b"], stride=2, relu=True)       # 64  @ H/4
    res2 = conv3x3(res1, p["layer2"]["w"], p["layer2"]["b"], stride=2, relu=True)  # 128 @ H/8
    res3 = conv3x3(res2, p["layer3"]["w"], p["layer3"]["b"], stride=2, relu=True)  # 256 @ H/16
    res4 = conv3x3(res3, p["layer4"]["w"], p["layer4"]["b"], stride=2, relu=True)  # 512 @ H/32
    return res1, res2, res3, res4


def decoder(p, res1, res2, res3, res4):
    # relu(conv1x1(concat(up2(hi), skip))) == relu(up2(hi @ W_hi) + skip @ W_skip + b)
    # y_lo is emitted in f32 so the whole sum accumulates in f32 (review item).
    outs = []
    hi = res4
    for skip, name in ((res3, "dec3"), (res2, "dec2"), (res1, "dec1")):
        w, b = p[name]["w"], p[name]["b"]
        c_hi = hi.shape[-1]
        cout = w.shape[1]
        y_lo = conv1x1([(hi, w[:c_hi])], jnp.zeros((cout,), jnp.float32),
                       out_dtype=jnp.float32)
        d = conv1x1([(skip, w[c_hi:])], b, residual=upsample(y_lo, 2), relu=True)
        outs.append(d)
        hi = d
    return outs   # [d3(256 @ H/16), d2(128 @ H/8), d1(64 @ H/4)]


def feature_fusion(p, a_df, b_df):
    names = ["ff0", "ff1", "ff2"]
    outs = []
    for a, b_, n in zip(a_df, b_df, names):
        w, bias = p[n]["w"], p[n]["b"]
        ca = a.shape[-1]
        outs.append(conv1x1([(a, w[:ca]), (b_, w[ca:])], bias, relu=True))
    return outs


def seg_head(p, f0, f1, f2):
    # f0: 256 @ H/16, f1: 128 @ H/8, f2: 64 @ H/4.  Heads stay bf16 until after
    # the upsample; cast to f32 only at the NCHW boundary.
    di = conv3x3(f2, p["seg_di_a"]["w"], p["seg_di_a"]["b"], stride=1, relu=True)
    di = conv1x1([(di, p["seg_di_b"]["w"])], p["seg_di_b"]["b"])
    segDImap = upsample(di, 4)
    segmap1 = upsample(conv1x1([(f1, p["seg1"]["w"])], p["seg1"]["b"]), 8)
    segmap2 = upsample(conv1x1([(f0, p["seg2"]["w"])], p["seg2"]["b"]), 16)
    return segDImap, segmap1, segmap2


def ds_layer(p, name, x):
    # DS_layer: ConvTranspose(stride=2, output_padding=1) -> nearest up2 + conv3x3
    x = conv3x3(upsample(x, 2), p[name + "_a"]["w"], p[name + "_a"]["b"],
                stride=1, relu=True)
    return conv3x3(x, p[name + "_b"]["w"], p[name + "_b"]["b"],
                   stride=1, relu=False)


def cdnet_forward(p, input1_nchw, input2_nchw):
    Bb = input1_nchw.shape[0]
    x = jnp.concatenate([input1_nchw, input2_nchw], axis=0)       # batch both branches
    x = jnp.transpose(x, (0, 2, 3, 1)).astype(jnp.bfloat16)       # NCHW -> NHWC, bf16
    res1, res2, res3, res4 = backbone(p, x)
    df = decoder(p, res1, res2, res3, res4)
    a_df = [t[:Bb] for t in df]
    b_df = [t[Bb:] for t in df]
    gf = feature_fusion(p, a_df, b_df)
    segDImap, segmap1, segmap2 = seg_head(p, gf[0], gf[1], gf[2])
    ds1 = ds_layer(p, "ds1", abs_diff(res1[:Bb], res1[Bb:]))      # n_class @ H/2
    ds2 = ds_layer(p, "ds2", abs_diff(res2[:Bb], res2[Bb:]))      # n_class @ H/4
    to_nchw = lambda t: jnp.transpose(t, (0, 3, 1, 2)).astype(jnp.float32)
    return tuple(to_nchw(t) for t in (segDImap, segmap1, segmap2, ds1, ds2))


# ----------------------------------------------------------------------------
# Reference check for conv3x3 (review correctness item)
# ----------------------------------------------------------------------------
def _conv3x3_reference(x_f32, w9_f32, b, stride):
    w_hwio = w9_f32.reshape(3, 3, x_f32.shape[-1], w9_f32.shape[-1])
    y = lax.conv_general_dilated(
        x_f32, w_hwio, window_strides=(stride, stride),
        padding=((1, 1), (1, 1)),
        dimension_numbers=("NHWC", "HWIO", "NHWC"))
    return y + b.astype(jnp.float32)


if __name__ == "__main__":
    # conv3x3 vs lax.conv spot check: stride 1, stride 2 (phase path), stride 2
    # with tiny Cin (im2col stem path).  Reference uses the same bf16-rounded
    # operands; kernel output kept in f32 for the comparison.
    for cfg_i, (cin, cout, stride) in enumerate(((16, 32, 1), (16, 32, 2),
                                                 (3, 16, 2))):
        kx, kw, kb = jax.random.split(jax.random.PRNGKey(100 + cfg_i), 3)
        xt = jax.random.normal(kx, (2, 12, 12, cin), jnp.float32)
        wt = jax.random.normal(kw, (9, cin, cout), jnp.float32) / math.sqrt(9 * cin)
        bt = 0.1 * jax.random.normal(kb, (cout,), jnp.float32)
        xt_b = xt.astype(jnp.bfloat16).astype(jnp.float32)
        wt_b = wt.astype(jnp.bfloat16).astype(jnp.float32)
        got = conv3x3(xt, wt, bt, stride=stride, relu=False,
                      out_dtype=jnp.float32)
        want = _conv3x3_reference(xt_b, wt_b, bt, stride)
        err = float(jnp.max(jnp.abs(got - want)))
        assert err < 6e-2, ("conv3x3 mismatch", cin, cout, stride, err)

    in_c, num_filters, n_class = 3, 64, 7
    B, H, W = 2, 32, 32

    key = jax.random.PRNGKey(0)
    k_params, k1, k2 = jax.random.split(key, 3)
    params = init_cdnet_params(k_params, in_c, num_filters, n_class)
    input1 = jax.random.normal(k1, (B, in_c, H, W), jnp.float32)
    input2 = jax.random.normal(k2, (B, in_c, H, W), jnp.float32)

    fwd = jax.jit(functools.partial(cdnet_forward, params))
    segDImap, segmap1, segmap2, ds1, ds2 = jax.block_until_ready(
        fwd(input1, input2))

    assert segDImap.shape == (B, n_class, H, W)
    assert segmap1.shape == (B, n_class, H, W)
    assert segmap2.shape == (B, n_class, H, W)
    assert ds1.shape == (B, n_class, H // 2, W // 2)
    assert ds2.shape == (B, n_class, H // 4, W // 4)
    assert all(bool(jnp.isfinite(t).all())
               for t in (segDImap, segmap1, segmap2, ds1, ds2))
    print("KERNEL_OK")
</pallas_src>

<mosaic_0001>
module attributes {stable_mosaic.version = 11 : i64} {
  func.func @_conv_tap_kernel(%arg0: i32, %arg1: i32, %arg2: memref<224x48xbf16, #tpu.memory_space<vmem>>, %arg3: memref<224x48xbf16, #tpu.memory_space<vmem>>, %arg4: memref<3x48x128xbf16, #tpu.memory_space<vmem>>, %arg5: memref<1x128xf32, #tpu.memory_space<vmem>>, %arg6: memref<224x128xf32, #tpu.memory_space<vmem>>, %arg7: memref<224x128xf32, #tpu.memory_space<vmem>>) attributes {dimension_semantics = [#tpu.dimension_semantics<parallel>, #tpu.dimension_semantics<parallel>], iteration_bounds = array<i64: 2, 1>, scalar_prefetch = 0 : i64, scratch_operands = 1 : i64, tpu.core_type = #tpu.core_type<tc>, window_params = [{transform_indices = @transform_0, window_bounds = array<i64: 224, 48>}, {transform_indices = @transform_1, window_bounds = array<i64: 224, 48>}, {transform_indices = @transform_2, window_bounds = array<i64: 3, 48, 128>}, {transform_indices = @transform_3, window_bounds = array<i64: 1, 128>}, {transform_indices = @transform_4, window_bounds = array<i64: 224, 128>}]} {
    %c0 = arith.constant 0 : index
    %c0_0 = arith.constant 0 : index
    %c0_1 = arith.constant 0 : index
    %0 = vector.load %arg4[%c0, %c0_0, %c0_1] : memref<3x48x128xbf16, #tpu.memory_space<vmem>>, vector<1x48x128xbf16>
    %1 = vector.shape_cast %0 : vector<1x48x128xbf16> to vector<48x128xbf16>
    %c0_2 = arith.constant 0 : index
    %c0_3 = arith.constant 0 : index
    %2 = vector.load %arg2[%c0_2, %c0_3] : memref<224x48xbf16, #tpu.memory_space<vmem>>, vector<224x48xbf16>
    %cst = arith.constant dense<0.000000e+00> : vector<224x128xf32>
    %3 = tpu.matmul %2, %1, %cst {dimension_numbers = #tpu.dot_dimension_numbers<[1], [0], [0], [1], [0, 0, 1, 1], [], []>} : vector<224x48xbf16>, vector<48x128xbf16>, vector<224x128xf32> -> vector<224x128xf32>
    %c0_4 = arith.constant 0 : index
    %c0_5 = arith.constant 0 : index
    %4 = vector.load %arg7[%c0_4, %c0_5] : memref<224x128xf32, #tpu.memory_space<vmem>>, vector<224x128xf32>
    tpu.vector_store %arg7[%c0_4, %c0_5], %3 {strides = array<i32>} : memref<224x128xf32, #tpu.memory_space<vmem>>, vector<224x128xf32>,
    %c1 = arith.constant 1 : index
    %c0_6 = arith.constant 0 : index
    %c0_7 = arith.constant 0 : index
    %5 = vector.load %arg4[%c1, %c0_6, %c0_7] : memref<3x48x128xbf16, #tpu.memory_space<vmem>>, vector<1x48x128xbf16>
    %6 = vector.shape_cast %5 : vector<1x48x128xbf16> to vector<48x128xbf16>
    %c0_8 = arith.constant 0 : index
    %c0_9 = arith.constant 0 : index
    %7 = vector.load %arg7[%c0_8, %c0_9] : memref<224x128xf32, #tpu.memory_space<vmem>>, vector<208x128xf32>
    %c16 = arith.constant 16 : index
    %c0_10 = arith.constant 0 : index
    %8 = vector.load %arg2[%c16, %c0_10] : memref<224x48xbf16, #tpu.memory_space<vmem>>, vector<208x48xbf16>
    %cst_11 = arith.constant dense<0.000000e+00> : vector<208x128xf32>
    %9 = tpu.matmul %8, %6, %cst_11 {dimension_numbers = #tpu.dot_dimension_numbers<[1], [0], [0], [1], [0, 0, 1, 1], [], []>} : vector<208x48xbf16>, vector<48x128xbf16>, vector<208x128xf32> -> vector<208x128xf32>
    %10 = arith.addf %7, %9 : vector<208x128xf32>
    %c0_12 = arith.constant 0 : index
    %c0_13 = arith.constant 0 : index
    %11 = vector.load %arg7[%c0_12, %c0_13] : memref<224x128xf32, #tpu.memory_space<vmem>>, vector<208x128xf32>
    tpu.vector_store %arg7[%c0_12, %c0_13], %10 {strides = array<i32>} : memref<224x128xf32, #tpu.memory_space<vmem>>, vector<208x128xf32>,
    %c208 = arith.constant 208 : index
    %c0_14 = arith.constant 0 : index
    %12 = vector.load %arg7[%c208, %c0_14] : memref<224x128xf32, #tpu.memory_space<vmem>>, vector<16x128xf32>
    %c0_15 = arith.constant 0 : index
    %c0_16 = arith.constant 0 : index
    %13 = vector.load %arg3[%c0_15, %c0_16] : memref<224x48xbf16, #tpu.memory_space<vmem>>, vector<16x48xbf16>
    %cst_17 = arith.constant dense<0.000000e+00> : vector<16x128xf32>
    %14 = tpu.matmul %13, %6, %cst_17 {dimension_numbers = #tpu.dot_dimension_numbers<[1], [0], [0], [1], [0, 0, 1, 1], [], []>} : vector<16x48xbf16>, vector<48x128xbf16>, vector<16x128xf32> -> vector<16x128xf32>
    %15 = arith.addf %12, %14 : vector<16x128xf32>
    %c208_18 = arith.constant 208 : index
    %c0_19 = arith.constant 0 : index
    %16 = vector.load %arg7[%c208_18, %c0_19] : memref<224x128xf32, #tpu.memory_space<vmem>>, vector<16x128xf32>
    tpu.vector_store %arg7[%c208_18, %c0_19], %15 {strides = array<i32>} : memref<224x128xf32, #tpu.memory_space<vmem>>, vector<16x128xf32>,
    %c2 = arith.constant 2 : index
    %c0_20 = arith.constant 0 : index
    %c0_21 = arith.constant 0 : index
    %17 = vector.load %arg4[%c2, %c0_20, %c0_21] : memref<3x48x128xbf16, #tpu.memory_space<vmem>>, vector<1x48x128xbf16>
    %18 = vector.shape_cast %17 : vector<1x48x128xbf16> to vector<48x128xbf16>
    %c0_22 = arith.constant 0 : index
    %c0_23 = arith.constant 0 : index
    %19 = vector.load %arg7[%c0_22, %c0_23] : memref<224x128xf32, #tpu.memory_space<vmem>>, vector<192x128xf32>
    %c32 = arith.constant 32 : index
    %c0_24 = arith.constant 0 : index
    %20 = vector.load %arg2[%c32, %c0_24] : memref<224x48xbf16, #tpu.memory_space<vmem>>, vector<192x48xbf16>
    %cst_25 = arith.constant dense<0.000000e+00> : vector<192x128xf32>
    %21 = tpu.matmul %20, %18, %cst_25 {dimension_numbers = #tpu.dot_dimension_numbers<[1], [0], [0], [1], [0, 0, 1, 1], [], []>} : vector<192x48xbf16>, vector<48x128xbf16>, vector<192x128xf32> -> vector<192x128xf32>
    %22 = arith.addf %19, %21 : vector<192x128xf32>
    %c0_26 = arith.constant 0 : index
    %c0_27 = arith.constant 0 : index
    %23 = vector.load %arg7[%c0_26, %c0_27] : memref<224x128xf32, #tpu.memory_space<vmem>>, vector<192x128xf32>
    tpu.vector_store %arg7[%c0_26, %c0_27], %22 {strides = array<i32>} : memref<224x128xf32, #tpu.memory_space<vmem>>, vector<192x128xf32>,
    %c192 = arith.constant 192 : index
    %c0_28 = arith.constant 0 : index
    %24 = vector.load %arg7[%c192, %c0_28] : memref<224x128xf32, #tpu.memory_space<vmem>>, vector<32x128xf32>
    %c0_29 = arith.constant 0 : index
    %c0_30 = arith.constant 0 : index
    %25 = vector.load %arg3[%c0_29, %c0_30] : memref<224x48xbf16, #tpu.memory_space<vmem>>, vector<32x48xbf16>
    %cst_31 = arith.constant dense<0.000000e+00> : vector<32x128xf32>
    %26 = tpu.matmul %25, %18, %cst_31 {dimension_numbers = #tpu.dot_dimension_numbers<[1], [0], [0], [1], [0, 0, 1, 1], [], []>} : vector<32x48xbf16>, vector<48x128xbf16>, vector<32x128xf32> -> vector<32x128xf32>
    %27 = arith.addf %24, %26 : vector<32x128xf32>
    %c192_32 = arith.constant 192 : index
    %c0_33 = arith.constant 0 : index
    %28 = vector.load %arg7[%c192_32, %c0_33] : memref<224x128xf32, #tpu.memory_space<vmem>>, vector<32x128xf32>
    tpu.vector_store %arg7[%c192_32, %c0_33], %27 {strides = array<i32>} : memref<224x128xf32, #tpu.memory_space<vmem>>, vector<32x128xf32>,
    %c0_34 = arith.constant 0 : index
    %c0_35 = arith.constant 0 : index
    %29 = vector.load %arg7[%c0_34, %c0_35] : memref<224x128xf32, #tpu.memory_space<vmem>>, vector<224x128xf32>
    %c0_36 = arith.constant 0 : index
    %c0_37 = arith.constant 0 : index
    %30 = vector.load %arg5[%c0_36, %c0_37] : memref<1x128xf32, #tpu.memory_space<vmem>>, vector<1x128xf32>
    %31 = vector.broadcast %30 : vector<1x128xf32> to vector<224x128xf32>
    %32 = arith.addf %29, %31 : vector<224x128xf32>
    %c0_38 = arith.constant 0 : index
    %c0_39 = arith.constant 0 : index
    %33 = vector.load %arg6[%c0_38, %c0_39] : memref<224x128xf32, #tpu.memory_space<vmem>>, vector<224x128xf32>
    tpu.vector_store %arg6[%c0_38, %c0_39], %32 {strides = array<i32>} : memref<224x128xf32, #tpu.memory_space<vmem>>, vector<224x128xf32>,
    return
  }
  func.func @transform_0(%arg0: i32, %arg1: i32) -> (i32, i32) {
    %c0_i32 = arith.constant 0 : i32
    %c0_i32_0 = arith.constant 0 : i32
    return %arg0, %c0_i32 : i32, i32
  }
  func.func @transform_1(%arg0: i32, %arg1: i32) -> (i32, i32) {
    %c1_i32 = arith.constant 1 : i32
    %0 = arith.addi %arg0, %c1_i32 : i32
    %c0_i32 = arith.constant 0 : i32
    %c0_i32_0 = arith.constant 0 : i32
    return %0, %c0_i32 : i32, i32
  }
  func.func @transform_2(%arg0: i32, %arg1: i32) -> (i32, i32, i32) {
    %c0_i32 = arith.constant 0 : i32
    %c0_i32_0 = arith.constant 0 : i32
    %c0_i32_1 = arith.constant 0 : i32
    return %c0_i32, %c0_i32_0, %arg1 : i32, i32, i32
  }
  func.func @transform_3(%arg0: i32, %arg1: i32) -> (i32, i32) {
    %c0_i32 = arith.constant 0 : i32
    %c0_i32_0 = arith.constant 0 : i32
    return %c0_i32, %arg1 : i32, i32
  }
  func.func @transform_4(%arg0: i32, %arg1: i32) -> (i32, i32) {
    %c0_i32 = arith.constant 0 : i32
    return %arg0, %arg1 : i32, i32
  }
}

</mosaic_0001>

<llo_original>
// kernel: tpu_custom_call.1
$region0: #{tpu_custom_call.1}
  #allocation0 [shape = 'u32[]', space=smem, size = 0x4, offset = 0x4, fixed_abs, tag = 'smem constant byte address 0x4 - core index']
  #allocation1 [shape = 'u32[144,128]{1,0:T(1,128)}', space=vmem, size = 0x12000, scoped, tag = 'internal scratch']
  #allocation2 [shape = 'f32[224,128]{1,0:T(8,128)}', space=vmem, size = 0x1c000, scoped, tag = 'scratch operand']
  %s0 = inlined_call_operand.vmem [shape: bf16[672,48], index: 0, kind: input, shape index: {}]
  %s1 = inlined_call_operand.vmem [shape: bf16[672,48], index: 1, kind: input, shape index: {}]
  %s2 = inlined_call_operand.vmem [shape: bf16[3,48,128], index: 2, kind: input, shape index: {}]
  %s3 = inlined_call_operand.vmem [shape: f32[1,128], index: 3, kind: input, shape index: {}]
  %s4 = inlined_call_operand.hbm [shape: f32[448,128], index: 4, kind: output, shape index: {}]
  %s5 = sld [smem:[#allocation0]]
  $region49: #{tpu_custom_call.1} parent=0
    _
  %s7 = ssub.s32 1, %s5
  %s8 = scalar_select 0, %s7, %s5
  $region1: #{tpu_custom_call.1} parent=0
    #allocation3 [shape = 'u8[229376]{0}', space=vmem, size = 0x38000, scoped, tag = 'output window, operand 0']
    #allocation4 [shape = 's32[2]{0}', space=sflag, size = 0x8, scoped, tag = 'scoped memory for tpu_custom_call.1']
    %9 = vsyncpa [#allocation4], 0
    %s10 = scalar_lea.sflag [#allocation4], 1
    %11 = vsyncpa %s10, 0
    loop: start=0, step=1, limit=4
    $region2: #{tpu_custom_call.1} parent=1 // loop_pre_header
      _
    $region3: #{tpu_custom_call.1} parent=1 // loop_header
      %s13 = sphi 0, %s17
      %p14 = scmp.ge.s32.totalorder %s13, 4
      %s20 = sphi 0, %s32
      %s21 = sphi 0, %s28
      %s22 = sphi 0, %s20
      %s23 = sphi 0, %s21
      %s24 = sphi 0, %s22
      %s25 = sphi 0, %s23
      %s35 = sphi 0, %s37
      %s38 = sphi 0, %s35
      %s39 = sphi 0, %s38
      %s55 = sphi 0, %s39
      %s63 = sphi 0, %s65
      %s66 = sphi 0, %s63
      %s67 = sphi 0, %s66
      %s83 = sphi 0, %s67
      %s89 = sphi 0, %s91
      %s92 = sphi 0, %s89
      %s93 = sphi 0, %s92
      %s109 = sphi 0, %s93
      %s115 = sphi 0, %s117
      %s118 = sphi 0, %s115
      %s119 = sphi 0, %s118
      %s135 = sphi 0, %s119
      %s143 = sphi 0, %s145
      %s146 = sphi 0, %s143
      %s147 = sphi 0, %s146
      %s163 = sphi 0, %s147
    $region4: #{tpu_custom_call.1} parent=1 // loop_header_branch
      %16 = sbr.rel (%p14) target = $region8
    $region5: #{tpu_custom_call.1} parent=1 // loop_body
      %s18 = ssub.s32 %s13, 1
      %s19 = ssub.s32 %s13, 2
      %s26 = sadd.s32 1, %s21
      %p27 = scmp.ge.s32.totalorder %s26, 1
      %s28 = scalar_select %p27, 0, %s26
      %s29 = sadd.s32 1, %s20
      %s30 = scalar_select %p27, %s29, %s20
      %p31 = scmp.ge.s32.totalorder %s30, 2
      %s32 = scalar_select %p31, 0, %s30
      %s33 = ssub.s32 %s20, %s32
      %p34 = scmp.eq.s32.totalorder %s33, 0
      %s36 = sadd.s32 %s35, 1
      %s37 = scalar_select %p34, %s35, %s36
      %p40 = pneg %p34
      %p41 = scmp.eq.s32.totalorder %s13, 1
      %p42 = por %p40, %p41
      %p43 = scmp.ne.s32.totalorder %s35, %s38
      %p44 = scmp.eq.s32.totalorder %s13, 0
      %p45 = por %p43, %p44
      %p46 = scmp.ne.s32.totalorder %s35, %s38
      %p47 = scmp.eq.s32.totalorder %s18, 1
      %p48 = por %p46, %p47
      %p49 = scmp.ne.s32.totalorder %s38, %s39
      %p50 = scmp.eq.s32.totalorder %s18, 0
      %p51 = por %p49, %p50
      %p52 = scmp.ne.s32.totalorder %s38, %s39
      %p53 = scmp.eq.s32.totalorder %s19, 1
      %p54 = por %p52, %p53
      %p56 = scmp.ne.s32.totalorder %s39, %s55
      %p57 = scmp.eq.s32.totalorder %s19, 0
      %p58 = por %p56, %p57
      %s59 = sadd.s32 %s20, 1
      %s60 = sadd.s32 %s32, 1
      %s61 = ssub.s32 %s59, %s60
      %p62 = scmp.eq.s32.totalorder %s61, 0
      %s64 = sadd.s32 %s63, 1
      %s65 = scalar_select %p62, %s63, %s64
      %p68 = pneg %p62
      %p69 = scmp.eq.s32.totalorder %s13, 1
      %p70 = por %p68, %p69
      %p71 = scmp.ne.s32.totalorder %s63, %s66
      %p72 = scmp.eq.s32.totalorder %s13, 0
      %p73 = por %p71, %p72
      %p74 = scmp.ne.s32.totalorder %s63, %s66
      %p75 = scmp.eq.s32.totalorder %s18, 1
      %p76 = por %p74, %p75
      %p77 = scmp.ne.s32.totalorder %s66, %s67
      %p78 = scmp.eq.s32.totalorder %s18, 0
      %p79 = por %p77, %p78
      %p80 = scmp.ne.s32.totalorder %s66, %s67
      %p81 = scmp.eq.s32.totalorder %s19, 1
      %p82 = por %p80, %p81
      %p84 = scmp.ne.s32.totalorder %s67, %s83
      %p85 = scmp.eq.s32.totalorder %s19, 0
      %p86 = por %p84, %p85
      %s87 = ssub.s32 %s21, %s28
      %p88 = scmp.eq.s32.totalorder %s87, 0
      %s90 = sadd.s32 %s89, 1
      %s91 = scalar_select %p88, %s89, %s90
      %p94 = pneg %p88
      %p95 = scmp.eq.s32.totalorder %s13, 1
      %p96 = por %p94, %p95
      %p97 = scmp.ne.s32.totalorder %s89, %s92
      %p98 = scmp.eq.s32.totalorder %s13, 0
      %p99 = por %p97, %p98
      %p100 = scmp.ne.s32.totalorder %s89, %s92
      %p101 = scmp.eq.s32.totalorder %s18, 1
      %p102 = por %p100, %p101
      %p103 = scmp.ne.s32.totalorder %s92, %s93
      %p104 = scmp.eq.s32.totalorder %s18, 0
      %p105 = por %p103, %p104
      %p106 = scmp.ne.s32.totalorder %s92, %s93
      %p107 = scmp.eq.s32.totalorder %s19, 1
      %p108 = por %p106, %p107
      %p110 = scmp.ne.s32.totalorder %s93, %s109
      %p111 = scmp.eq.s32.totalorder %s19, 0
      %p112 = por %p110, %p111
      %s113 = ssub.s32 %s21, %s28
      %p114 = scmp.eq.s32.totalorder %s113, 0
      %s116 = sadd.s32 %s115, 1
      %s117 = scalar_select %p114, %s115, %s116
      %p120 = pneg %p114
      %p121 = scmp.eq.s32.totalorder %s13, 1
      %p122 = por %p120, %p121
      %p123 = scmp.ne.s32.totalorder %s115, %s118
      %p124 = scmp.eq.s32.totalorder %s13, 0
      %p125 = por %p123, %p124
      %p126 = scmp.ne.s32.totalorder %s115, %s118
      %p127 = scmp.eq.s32.totalorder %s18, 1
      %p128 = por %p126, %p127
      %p129 = scmp.ne.s32.totalorder %s118, %s119
      %p130 = scmp.eq.s32.totalorder %s18, 0
      %p131 = por %p129, %p130
      %p132 = scmp.ne.s32.totalorder %s118, %s119
      %p133 = scmp.eq.s32.totalorder %s19, 1
      %p134 = por %p132, %p133
      %p136 = scmp.ne.s32.totalorder %s119, %s135
      %p137 = scmp.eq.s32.totalorder %s19, 0
      %p138 = por %p136, %p137
      %s139 = ssub.s32 %s20, %s32
      %s140 = ssub.s32 %s21, %s28
      %s141 = sor.u32 %s139, %s140
      %p142 = scmp.eq.s32.totalorder %s141, 0
      %s144 = sadd.s32 %s143, 1
      %s145 = scalar_select %p142, %s143, %s144
      %p148 = pneg %p142
      %p149 = scmp.eq.s32.totalorder %s13, 1
      %p150 = por %p148, %p149
      %p151 = scmp.ne.s32.totalorder %s143, %s146
      %p152 = scmp.eq.s32.totalorder %s13, 0
      %p153 = por %p151, %p152
      %p154 = scmp.ne.s32.totalorder %s143, %s146
      %p155 = scmp.eq.s32.totalorder %s18, 1
      %p156 = por %p154, %p155
      %p157 = scmp.ne.s32.totalorder %s146, %s147
      %p158 = scmp.eq.s32.totalorder %s18, 0
      %p159 = por %p157, %p158
      %p160 = scmp.ne.s32.totalorder %s146, %s147
      %p161 = scmp.eq.s32.totalorder %s19, 1
      %p162 = por %p160, %p161
      %p164 = scmp.ne.s32.totalorder %s147, %s163
      %p165 = scmp.eq.s32.totalorder %s19, 0
      %p166 = por %p164, %p165
      %p167 = scmp.le.s32.totalorder 1, %s13
      %p168 = scmp.lt.s32.totalorder %s13, 3
      %p169 = pnand %p167, %p168
      %p170 = pneg %p169
      // Predicated region
      $region9: #{tpu_custom_call.1} parent=5 // pred_check
        _
      $region10: #{tpu_custom_call.1} parent=5 // pred_check_branch
        %172 = sbr.rel (%p169) target = $region12
      $region11: #{tpu_custom_call.1} parent=5 // pred_region
        %s173 = ssub.s32 %s13, 1
        // Predicated region
        $region13: #{tpu_custom_call.1} parent=11 // pred_check
          %p174 = pneg %p105
        $region14: #{tpu_custom_call.1} parent=11 // pred_check_branch
          %176 = sbr.rel (%p174) target = $region16
        $region15: #{tpu_custom_call.1} parent=11 // pred_region
          %p177 = scmp.lt.s32.totalorder %s23, 0
          %s178 = scalar_select %p177, %s23, 0
          %s179 = smul.addr %s178, 4
          %s180 = scalar_lea.vmem %s2, %s179
        $region16: #{tpu_custom_call.1} parent=11 // pred_fallthru
          _
        // Predicated region
        $region17: #{tpu_custom_call.1} parent=11 // pred_check
          %p181 = pneg %p131
        $region18: #{tpu_custom_call.1} parent=11 // pred_check_branch
          %183 = sbr.rel (%p181) target = $region20
        $region19: #{tpu_custom_call.1} parent=11 // pred_region
          %p184 = scmp.lt.s32.totalorder %s23, 0
          %s185 = scalar_select %p184, %s23, 0
          %s186 = scalar_lea.vmem %s3, %s185
        $region20: #{tpu_custom_call.1} parent=11 // pred_fallthru
          _
      $region12: #{tpu_custom_call.1} parent=5 // pred_fallthru
        _
      %p187 = scmp.lt.s32.totalorder %s13, 2
      // Predicated region
      $region21: #{tpu_custom_call.1} parent=5 // pred_check
        %p188 = pneg %p187
      $region22: #{tpu_custom_call.1} parent=5 // pred_check_branch
        %190 = sbr.rel (%p188) target = $region24
      $region23: #{tpu_custom_call.1} parent=5 // pred_region
        // Predicated region
        $region25: #{tpu_custom_call.1} parent=23 // pred_check
          %p191 = pneg %p45
        $region26: #{tpu_custom_call.1} parent=23 // pred_check_branch
          %193 = sbr.rel (%p191) target = $region28
        $region27: #{tpu_custom_call.1} parent=23 // pred_region
          %s194 = smul.u32 28, %s20
          %p195 = scmp.lt.s32.totalorder %s194, 83
          %s196 = scalar_select %p195, %s194, 83
          %s197 = smul.addr %s196, 4
          %s198 = scalar_lea.vmem %s0, %s197
          %s199 = smul.u32 28, %s20
        $region28: #{tpu_custom_call.1} parent=23 // pred_fallthru
          _
        // Predicated region
        $region29: #{tpu_custom_call.1} parent=23 // pred_check
          %p200 = pneg %p73
        $region30: #{tpu_custom_call.1} parent=23 // pred_check_branch
          %202 = sbr.rel (%p200) target = $region32
        $region31: #{tpu_custom_call.1} parent=23 // pred_region
          %s203 = sadd.s32 %s20, 1
          %s204 = smul.u32 28, %s203
          %p205 = scmp.lt.s32.totalorder %s204, 83
          %s206 = scalar_select %p205, %s204, 83
          %s207 = smul.addr %s206, 4
          %s208 = scalar_lea.vmem %s1, %s207
          %s209 = sadd.s32 %s20, 1
          %s210 = smul.u32 28, %s209
        $region32: #{tpu_custom_call.1} parent=23 // pred_fallthru
          _
      $region24: #{tpu_custom_call.1} parent=5 // pred_fallthru
        _
      %p211 = scmp.le.s32.totalorder 1, %s13
      %p212 = scmp.lt.s32.totalorder %s13, 3
      %p213 = pnand %p211, %p212
      %p214 = pneg %p213
      // Predicated region
      $region33: #{tpu_custom_call.1} parent=5 // pred_check
        _
      $region34: #{tpu_custom_call.1} parent=5 // pred_check_branch
        %216 = sbr.rel (%p213) target = $region36
      $region35: #{tpu_custom_call.1} parent=5 // pred_region
        %s217 = ssub.s32 %s13, 1
        %s218 = smul.u32 28, %s22
        %p219 = scmp.lt.s32.totalorder %s218, 83
        %s220 = scalar_select %p219, %s218, 83
        %s221 = smul.addr %s220, 4
        %s222 = scalar_lea.vmem %s0, %s221
        %p223 = pneg %p51
        %p224 = pneg %p48
        %s225 = sadd.s32 %s22, 1
        %s226 = smul.u32 28, %s225
        %p227 = scmp.lt.s32.totalorder %s226, 83
        %s228 = scalar_select %p227, %s226, 83
        %s229 = smul.addr %s228, 4
        %s230 = scalar_lea.vmem %s1, %s229
        %p231 = pneg %p79
        %p232 = pneg %p76
        %p233 = scmp.lt.s32.totalorder %s23, 0
        %s234 = scalar_select %p233, %s23, 0
        %s235 = smul.addr %s234, 4
        %s236 = scalar_lea.vmem %s2, %s235
        %p237 = pneg %p105
        %p238 = pneg %p102
        %p239 = scmp.lt.s32.totalorder %s23, 0
        %s240 = scalar_select %p239, %s23, 0
        %s241 = scalar_lea.vmem %s3, %s240
        %p242 = pneg %p131
        %p243 = pneg %p128
        %p244 = pneg %p159
        %p245 = pneg %p156
        %s246 = sand.u32 %s146, 1
        %s247 = scalar_lea.sflag [#allocation4], %s246
        %s248 = sand.u32 %s146, 1
        %s249 = smul.addr %s248, 224
        %s250 = scalar_lea.vmem [#allocation3], %s249
        %s251 = smul.u32 28, %s22
        %p252 = scmp.lt.s32.totalorder %s251, 83
        %s253 = scalar_select %p252, %s251, 83
        %s254 = smul.addr %s253, 4
        %s255 = scalar_lea.vmem %s0, %s254
        %s256 = smul.u32 28, %s22
        %s257 = sadd.s32 %s22, 1
        %s258 = smul.u32 28, %s257
        %p259 = scmp.lt.s32.totalorder %s258, 83
        %s260 = scalar_select %p259, %s258, 83
        %s261 = smul.addr %s260, 4
        %s262 = scalar_lea.vmem %s1, %s261
        %s263 = sadd.s32 %s22, 1
        %s264 = smul.u32 28, %s263
        %p265 = scmp.lt.s32.totalorder %s23, 0
        %s266 = scalar_select %p265, %s23, 0
        %s267 = smul.addr %s266, 4
        %s268 = scalar_lea.vmem %s2, %s267
        %p269 = scmp.lt.s32.totalorder %s23, 0
        %s270 = scalar_select %p269, %s23, 0
        %s271 = scalar_lea.vmem %s3, %s270
        %s272 = smul.u32 28, %s22
        %v274 = vld [vmem:[%s268] sm:$0xf]
        %v275 = vld [vmem:[%s268 + $0x4] sm:$0xf]
        %v276 = vld [vmem:[%s268 + $0x8] sm:$0xf]
        %v277 = vld [vmem:[%s268 + $0xc] sm:$0xf]
        %v278 = vld [vmem:[%s268 + $0x10] sm:$0xf]
        %v279 = vld [vmem:[%s268 + $0x14] sm:$0xf]
        %v280 = vld [vmem:[%s255] sm:$0xf]
        %v281 = vld [vmem:[%s255 + $0x4] sm:$0xf]
        %v282 = vld [vmem:[%s255 + $0x8] sm:$0xf]
        %v283 = vld [vmem:[%s255 + $0xc] sm:$0xf]
        %v284 = vld [vmem:[%s255 + $0x10] sm:$0xf]
        %v285 = vld [vmem:[%s255 + $0x14] sm:$0xf]
        %v286 = vld [vmem:[%s255 + $0x18] sm:$0xf]
        %v287 = vld [vmem:[%s255 + $0x1c] sm:$0xf]
        %v288 = vld [vmem:[%s255 + $0x20] sm:$0xf]
        %v289 = vld [vmem:[%s255 + $0x24] sm:$0xf]
        %v290 = vld [vmem:[%s255 + $0x28] sm:$0xf]
        %v291 = vld [vmem:[%s255 + $0x2c] sm:$0xf]
        %v292 = vld [vmem:[%s255 + $0x30] sm:$0xf]
        %v293 = vld [vmem:[%s255 + $0x34] sm:$0xf]
        %v294 = vld [vmem:[%s255 + $0x38] sm:$0xf]
        %v295 = vld [vmem:[%s255 + $0x3c] sm:$0xf]
        %v296 = vld [vmem:[%s255 + $0x40] sm:$0xf]
        %v297 = vld [vmem:[%s255 + $0x44] sm:$0xf]
        %v298 = vld [vmem:[%s255 + $0x48] sm:$0xf]
        %v299 = vld [vmem:[%s255 + $0x4c] sm:$0xf]
        %v300 = vld [vmem:[%s255 + $0x50] sm:$0xf]
        %v301 = vld [vmem:[%s255 + $0x54] sm:$0xf]
        %v302 = vld [vmem:[%s255 + $0x58] sm:$0xf]
        %v303 = vld [vmem:[%s255 + $0x5c] sm:$0xf]
        %v304 = vld [vmem:[%s255 + $0x60] sm:$0xf]
        %v305 = vld [vmem:[%s255 + $0x64] sm:$0xf]
        %v306 = vld [vmem:[%s255 + $0x68] sm:$0xf]
        %v307 = vld [vmem:[%s255 + $0x6c] sm:$0xf]
        %v336 = vunpack.c.l.b16 %v280
        %v337 = vunpack.c.l.b16 %v281
        %v338 = vunpack.c.l.b16 %v282
        %v339 = vunpack.c.l.b16 %v283
        %v340 = vunpack.c.l.b16 %v284
        %v341 = vunpack.c.l.b16 %v285
        %v342 = vunpack.c.l.b16 %v286
        %v343 = vunpack.c.l.b16 %v287
        %v344 = vunpack.c.l.b16 %v288
        %v345 = vunpack.c.l.b16 %v289
        %v346 = vunpack.c.l.b16 %v290
        %v347 = vunpack.c.l.b16 %v291
        %v348 = vunpack.c.l.b16 %v292
        %v349 = vunpack.c.l.b16 %v293
        %v350 = vunpack.c.l.b16 %v294
        %v351 = vunpack.c.l.b16 %v295
        %v352 = vunpack.c.l.b16 %v296
        %v353 = vunpack.c.l.b16 %v297
        %v354 = vunpack.c.l.b16 %v298
        %v355 = vunpack.c.l.b16 %v299
        %v356 = vunpack.c.l.b16 %v300
        %v357 = vunpack.c.l.b16 %v301
        %v358 = vunpack.c.l.b16 %v302
        %v359 = vunpack.c.l.b16 %v303
        %v360 = vunpack.c.l.b16 %v304
        %v361 = vunpack.c.l.b16 %v305
        %v362 = vunpack.c.l.b16 %v306
        %v363 = vunpack.c.l.b16 %v307
        %v364 = vpack.c.b16 %v337, %v336
        %v365 = vpack.c.b16 %v339, %v338
        %v366 = vpack.c.b16 %v341, %v340
        %v367 = vpack.c.b16 %v343, %v342
        %v368 = vpack.c.b16 %v345, %v344
        %v369 = vpack.c.b16 %v347, %v346
        %v370 = vpack.c.b16 %v349, %v348
        %v371 = vpack.c.b16 %v351, %v350
        %v372 = vpack.c.b16 %v353, %v352
        %v373 = vpack.c.b16 %v355, %v354
        %v374 = vpack.c.b16 %v357, %v356
        %v375 = vpack.c.b16 %v359, %v358
        %v376 = vpack.c.b16 %v361, %v360
        %v377 = vpack.c.b16 %v363, %v362
        %v384 = vunpack.c.l.b16 %v274
        %v385 = vunpack.c.l.b16 %v275
        %v386 = vunpack.c.l.b16 %v276
        %v387 = vunpack.c.l.b16 %v277
        %v388 = vunpack.c.l.b16 %v278
        %v389 = vunpack.c.l.b16 %v279
        %v390 = vpack.c.b16 %v385, %v384
        %v391 = vpack.c.b16 %v387, %v386
        %v392 = vpack.c.b16 %v389, %v388
        %vm396 = vcmask 392192
        %v398 = vsel %vm396, %v364, 0
        %v401 = vsel %vm396, %v365, 0
        %v404 = vsel %vm396, %v366, 0
        %v407 = vsel %vm396, %v367, 0
        %v410 = vsel %vm396, %v368, 0
        %v413 = vsel %vm396, %v369, 0
        %v416 = vsel %vm396, %v370, 0
        %v419 = vsel %vm396, %v371, 0
        %v422 = vsel %vm396, %v372, 0
        %v425 = vsel %vm396, %v373, 0
        %v428 = vsel %vm396, %v374, 0
        %v431 = vsel %vm396, %v375, 0
        %v434 = vsel %vm396, %v376, 0
        %v437 = vsel %vm396, %v377, 0
        %439 = vmatprep.subr.bf16.mxu0 0
        %440 = vmatpush1.bf16.msra.mxu0 %v390
        %441 = vmatprep.subr.bf16.mxu0 0
        %442 = vmatpush1.bf16.msra.mxu0 %v391
        %443 = vmatprep.subr.bf16.mxu0 0
        %444 = vmatpush1.bf16.msra.mxu0 %v392
        %445 = vmatprep.subr.bf16.mxu0 0
        %446 = vmatpush1.bf16.msra.mxu0 0
        %447 = vmatprep.subr.bf16.mxu0 0
        %448 = vmatpush1.bf16.msra.mxu0 0
        %449 = vmatprep.subr.bf16.mxu0 0
        %450 = vmatpush1.bf16.msra.mxu0 0
        %451 = vmatprep.subr.bf16.mxu0 0
        %452 = vmatpush1.bf16.msra.mxu0 0
        %453 = vmatprep.subr.bf16.mxu0 0
        %454 = vmatpush1.bf16.msra.mxu0 0
        %455 = vmatprep.subr.bf16.mxu0 0
        %456 = vmatpush1.bf16.msra.mxu0 0
        %457 = vmatprep.subr.bf16.mxu0 0
        %458 = vmatpush1.bf16.msra.mxu0 0
        %459 = vmatprep.subr.bf16.mxu0 0
        %460 = vmatpush1.bf16.msra.mxu0 0
        %461 = vmatprep.subr.bf16.mxu0 0
        %462 = vmatpush1.bf16.msra.mxu0 0
        %463 = vmatprep.subr.bf16.mxu0 0
        %464 = vmatpush1.bf16.msra.mxu0 0
        %465 = vmatprep.subr.bf16.mxu0 0
        %466 = vmatpush1.bf16.msra.mxu0 0
        %467 = vmatprep.subr.bf16.mxu0 0
        %468 = vmatpush1.bf16.msra.mxu0 0
        %469 = vmatprep.subr.bf16.mxu0 0
        %470 = vmatpush1.bf16.msra.mxu0 0
        %471 = vmatprep.mubr.bf16.mxu0 0
        %472 = vmatmul.mubr.bf16.gmra.mrb[0].mxu0 %v398
        %v473 = vpop.f32.mrb[0].mxu0
        %v474 = vadd.f32 0.0, %v473
        %v475 = vpop.f32.mrb[0].mxu0
        %v476 = vpop.f32.mrb[0].mxu0
        %v477 = vadd.f32 0.0, %v476
        %v478 = vpop.f32.mrb[0].mxu0
        %479 = vmatprep.mubr.bf16.mxu0 0
        %480 = vmatmul.mubr.bf16.gmra.mrb[0].mxu0 %v401
        %v481 = vpop.f32.mrb[0].mxu0
        %v482 = vadd.f32 0.0, %v481
        %v483 = vpop.f32.mrb[0].mxu0
        %v484 = vpop.f32.mrb[0].mxu0
        %v485 = vadd.f32 0.0, %v484
        %v486 = vpop.f32.mrb[0].mxu0
        %487 = vmatprep.mubr.bf16.mxu0 0
        %488 = vmatmul.mubr.bf16.gmra.mrb[0].mxu0 %v404
        %v489 = vpop.f32.mrb[0].mxu0
        %v490 = vadd.f32 0.0, %v489
        %v491 = vpop.f32.mrb[0].mxu0
        %v492 = vpop.f32.mrb[0].mxu0
        %v493 = vadd.f32 0.0, %v492
        %v494 = vpop.f32.mrb[0].mxu0
        %495 = vmatprep.mubr.bf16.mxu0 0
        %496 = vmatmul.mubr.bf16.gmra.mrb[0].mxu0 %v407
        %v497 = vpop.f32.mrb[0].mxu0
        %v498 = vadd.f32 0.0, %v497
        %v499 = vpop.f32.mrb[0].mxu0
        %v500 = vpop.f32.mrb[0].mxu0
        %v501 = vadd.f32 0.0, %v500
        %v502 = vpop.f32.mrb[0].mxu0
        %503 = vmatprep.mubr.bf16.mxu0 0
        %504 = vmatmul.mubr.bf16.gmra.mrb[0].mxu0 %v410
        %v505 = vpop.f32.mrb[0].mxu0
        %v506 = vadd.f32 0.0, %v505
        %v507 = vpop.f32.mrb[0].mxu0
        %v508 = vpop.f32.mrb[0].mxu0
        %v509 = vadd.f32 0.0, %v508
        %v510 = vpop.f32.mrb[0].mxu0
        %511 = vmatprep.mubr.bf16.mxu0 0
        %512 = vmatmul.mubr.bf16.gmra.mrb[0].mxu0 %v413
        %v513 = vpop.f32.mrb[0].mxu0
        %v514 = vadd.f32 0.0, %v513
        %v515 = vpop.f32.mrb[0].mxu0
        %v516 = vpop.f32.mrb[0].mxu0
        %v517 = vadd.f32 0.0, %v516
        %v518 = vpop.f32.mrb[0].mxu0
        %519 = vmatprep.mubr.bf16.mxu0 0
        %520 = vmatmul.mubr.bf16.gmra.mrb[0].mxu0 %v416
        %v521 = vpop.f32.mrb[0].mxu0
        %v522 = vadd.f32 0.0, %v521
        %v523 = vpop.f32.mrb[0].mxu0
        %v524 = vpop.f32.mrb[0].mxu0
        %v525 = vadd.f32 0.0, %v524
        %v526 = vpop.f32.mrb[0].mxu0
        %527 = vmatprep.mubr.bf16.mxu0 0
        %528 = vmatmul.mubr.bf16.gmra.mrb[0].mxu0 %v419
        %v529 = vpop.f32.mrb[0].mxu0
        %v530 = vadd.f32 0.0, %v529
        %v531 = vpop.f32.mrb[0].mxu0
        %v532 = vpop.f32.mrb[0].mxu0
        %v533 = vadd.f32 0.0, %v532
        %v534 = vpop.f32.mrb[0].mxu0
        %535 = vmatprep.mubr.bf16.mxu0 0
        %536 = vmatmul.mubr.bf16.gmra.mrb[0].mxu0 %v422
        %v537 = vpop.f32.mrb[0].mxu0
        %v538 = vadd.f32 0.0, %v537
        %v539 = vpop.f32.mrb[0].mxu0
        %v540 = vpop.f32.mrb[0].mxu0
        %v541 = vadd.f32 0.0, %v540
        %v542 = vpop.f32.mrb[0].mxu0
        %543 = vmatprep.mubr.bf16.mxu0 0
        %544 = vmatmul.mubr.bf16.gmra.mrb[0].mxu0 %v425
        %v545 = vpop.f32.mrb[0].mxu0
        %v546 = vadd.f32 0.0, %v545
        %v547 = vpop.f32.mrb[0].mxu0
        %v548 = vpop.f32.mrb[0].mxu0
        %v549 = vadd.f32 0.0, %v548
        %v550 = vpop.f32.mrb[0].mxu0
        %551 = vmatprep.mubr.bf16.mxu0 0
        %552 = vmatmul.mubr.bf16.gmra.mrb[0].mxu0 %v428
        %v553 = vpop.f32.mrb[0].mxu0
        %v554 = vadd.f32 0.0, %v553
        %v555 = vpop.f32.mrb[0].mxu0
        %v556 = vpop.f32.mrb[0].mxu0
        %v557 = vadd.f32 0.0, %v556
        %v558 = vpop.f32.mrb[0].mxu0
        %559 = vmatprep.mubr.bf16.mxu0 0
        %560 = vmatmul.mubr.bf16.gmra.mrb[0].mxu0 %v431
        %v561 = vpop.f32.mrb[0].mxu0
        %v562 = vadd.f32 0.0, %v561
        %v563 = vpop.f32.mrb[0].mxu0
        %v564 = vpop.f32.mrb[0].mxu0
        %v565 = vadd.f32 0.0, %v564
        %v566 = vpop.f32.mrb[0].mxu0
        %567 = vmatprep.mubr.bf16.mxu0 0
        %568 = vmatmul.mubr.bf16.gmra.mrb[0].mxu0 %v434
        %v569 = vpop.f32.mrb[0].mxu0
        %v570 = vadd.f32 0.0, %v569
        %v571 = vpop.f32.mrb[0].mxu0
        %v572 = vpop.f32.mrb[0].mxu0
        %v573 = vadd.f32 0.0, %v572
        %v574 = vpop.f32.mrb[0].mxu0
        %575 = vmatprep.mubr.bf16.mxu0 0
        %576 = vmatmul.mubr.bf16.gmra.mrb[0].mxu0 %v437
        %v577 = vpop.f32.mrb[0].mxu0
        %v578 = vadd.f32 0.0, %v577
        %v579 = vpop.f32.mrb[0].mxu0
        %v580 = vpop.f32.mrb[0].mxu0
        %v581 = vadd.f32 0.0, %v580
        %v582 = vpop.f32.mrb[0].mxu0
        %583 = vdwg.mxu0
        %584 = vst [vmem:[#allocation2] sm:$0xff] %v474
        %585 = vst [vmem:[#allocation2 + $0x8] sm:$0xff] %v477
        %586 = vst [vmem:[#allocation2 + $0x10] sm:$0xff] %v482
        %587 = vst [vmem:[#allocation2 + $0x18] sm:$0xff] %v485
        %588 = vst [vmem:[#allocation2 + $0x20] sm:$0xff] %v490
        %589 = vst [vmem:[#allocation2 + $0x28] sm:$0xff] %v493
        %590 = vst [vmem:[#allocation2 + $0x30] sm:$0xff] %v498
        %591 = vst [vmem:[#allocation2 + $0x38] sm:$0xff] %v501
        %592 = vst [vmem:[#allocation2 + $0x40] sm:$0xff] %v506
        %593 = vst [vmem:[#allocation2 + $0x48] sm:$0xff] %v509
        %594 = vst [vmem:[#allocation2 + $0x50] sm:$0xff] %v514
        %595 = vst [vmem:[#allocation2 + $0x58] sm:$0xff] %v517
        %596 = vst [vmem:[#allocation2 + $0x60] sm:$0xff] %v522
        %597 = vst [vmem:[#allocation2 + $0x68] sm:$0xff] %v525
        %598 = vst [vmem:[#allocation2 + $0x70] sm:$0xff] %v530
        %599 = vst [vmem:[#allocation2 + $0x78] sm:$0xff] %v533
        %600 = vst [vmem:[#allocation2 + $0x80] sm:$0xff] %v538
        %601 = vst [vmem:[#allocation2 + $0x88] sm:$0xff] %v541
        %602 = vst [vmem:[#allocation2 + $0x90] sm:$0xff] %v546
        %603 = vst [vmem:[#allocation2 + $0x98] sm:$0xff] %v549
        %604 = vst [vmem:[#allocation2 + $0xa0] sm:$0xff] %v554
        %605 = vst [vmem:[#allocation2 + $0xa8] sm:$0xff] %v557
        %606 = vst [vmem:[#allocation2 + $0xb0] sm:$0xff] %v562
        %607 = vst [vmem:[#allocation2 + $0xb8] sm:$0xff] %v565
        %608 = vst [vmem:[#allocation2 + $0xc0] sm:$0xff] %v570
        %609 = vst [vmem:[#allocation2 + $0xc8] sm:$0xff] %v573
        %610 = vst [vmem:[#allocation2 + $0xd0] sm:$0xff] %v578
        %611 = vst [vmem:[#allocation2 + $0xd8] sm:$0xff] %v581
        %s612 = scalar_lea.vmem %s268, 24
        %v613 = vld [vmem:[%s612] sm:$0xf]
        %v614 = vld [vmem:[%s612 + $0x4] sm:$0xf]
        %v615 = vld [vmem:[%s612 + $0x8] sm:$0xf]
        %v616 = vld [vmem:[%s612 + $0xc] sm:$0xf]
        %v617 = vld [vmem:[%s612 + $0x10] sm:$0xf]
        %v618 = vld [vmem:[%s612 + $0x14] sm:$0xf]
        %v619 = vld [vmem:[#allocation2] sm:$0xff]
        %v620 = vld [vmem:[#allocation2 + $0x8] sm:$0xff]
        %v621 = vld [vmem:[#allocation2 + $0x10] sm:$0xff]
        %v622 = vld [vmem:[#allocation2 + $0x18] sm:$0xff]
        %v623 = vld [vmem:[#allocation2 + $0x20] sm:$0xff]
        %v624 = vld [vmem:[#allocation2 + $0x28] sm:$0xff]
        %v625 = vld [vmem:[#allocation2 + $0x30] sm:$0xff]
        %v626 = vld [vmem:[#allocation2 + $0x38] sm:$0xff]
        %v627 = vld [vmem:[#allocation2 + $0x40] sm:$0xff]
        %v628 = vld [vmem:[#allocation2 + $0x48] sm:$0xff]
        %v629 = vld [vmem:[#allocation2 + $0x50] sm:$0xff]
        %v630 = vld [vmem:[#allocation2 + $0x58] sm:$0xff]
        %v631 = vld [vmem:[#allocation2 + $0x60] sm:$0xff]
        %v632 = vld [vmem:[#allocation2 + $0x68] sm:$0xff]
        %v633 = vld [vmem:[#allocation2 + $0x70] sm:$0xff]
        %v634 = vld [vmem:[#allocation2 + $0x78] sm:$0xff]
        %v635 = vld [vmem:[#allocation2 + $0x80] sm:$0xff]
        %v636 = vld [vmem:[#allocation2 + $0x88] sm:$0xff]
        %v637 = vld [vmem:[#allocation2 + $0x90] sm:$0xff]
        %v638 = vld [vmem:[#allocation2 + $0x98] sm:$0xff]
        %v639 = vld [vmem:[#allocation2 + $0xa0] sm:$0xff]
        %v640 = vld [vmem:[#allocation2 + $0xa8] sm:$0xff]
        %v641 = vld [vmem:[#allocation2 + $0xb0] sm:$0xff]
        %v642 = vld [vmem:[#allocation2 + $0xb8] sm:$0xff]
        %v643 = vld [vmem:[#allocation2 + $0xc0] sm:$0xff]
        %v644 = vld [vmem:[#allocation2 + $0xc8] sm:$0xff]
        %v645 = vld [vmem:[%s255 + $0x8] sm:$0xf]
        %v646 = vld [vmem:[%s255 + $0xc] sm:$0xf]
        %v647 = vld [vmem:[%s255 + $0x10] sm:$0xf]
        %v648 = vld [vmem:[%s255 + $0x14] sm:$0xf]
        %v649 = vld [vmem:[%s255 + $0x18] sm:$0xf]
        %v650 = vld [vmem:[%s255 + $0x1c] sm:$0xf]
        %v651 = vld [vmem:[%s255 + $0x20] sm:$0xf]
        %v652 = vld [vmem:[%s255 + $0x24] sm:$0xf]
        %v653 = vld [vmem:[%s255 + $0x28] sm:$0xf]
        %v654 = vld [vmem:[%s255 + $0x2c] sm:$0xf]
        %v655 = vld [vmem:[%s255 + $0x30] sm:$0xf]
        %v656 = vld [vmem:[%s255 + $0x34] sm:$0xf]
        %v657 = vld [vmem:[%s255 + $0x38] sm:$0xf]
        %v658 = vld [vmem:[%s255 + $0x3c] sm:$0xf]
        %v659 = vld [vmem:[%s255 + $0x40] sm:$0xf]
        %v660 = vld [vmem:[%s255 + $0x44] sm:$0xf]
        %v661 = vld [vmem:[%s255 + $0x48] sm:$0xf]
        %v662 = vld [vmem:[%s255 + $0x4c] sm:$0xf]
        %v663 = vld [vmem:[%s255 + $0x50] sm:$0xf]
        %v664 = vld [vmem:[%s255 + $0x54] sm:$0xf]
        %v665 = vld [vmem:[%s255 + $0x58] sm:$0xf]
        %v666 = vld [vmem:[%s255 + $0x5c] sm:$0xf]
        %v667 = vld [vmem:[%s255 + $0x60] sm:$0xf]
        %v668 = vld [vmem:[%s255 + $0x64] sm:$0xf]
        %v669 = vld [vmem:[%s255 + $0x68] sm:$0xf]
        %v670 = vld [vmem:[%s255 + $0x6c] sm:$0xf]
        %v697 = vunpack.c.l.b16 %v645
        %v698 = vunpack.c.l.b16 %v646
        %v699 = vunpack.c.l.b16 %v647
        %v700 = vunpack.c.l.b16 %v648
        %v701 = vunpack.c.l.b16 %v649
        %v702 = vunpack.c.l.b16 %v650
        %v703 = vunpack.c.l.b16 %v651
        %v704 = vunpack.c.l.b16 %v652
        %v705 = vunpack.c.l.b16 %v653
        %v706 = vunpack.c.l.b16 %v654
        %v707 = vunpack.c.l.b16 %v655
        %v708 = vunpack.c.l.b16 %v656
        %v709 = vunpack.c.l.b16 %v657
        %v710 = vunpack.c.l.b16 %v658
        %v711 = vunpack.c.l.b16 %v659
        %v712 = vunpack.c.l.b16 %v660
        %v713 = vunpack.c.l.b16 %v661
        %v714 = vunpack.c.l.b16 %v662
        %v715 = vunpack.c.l.b16 %v663
        %v716 = vunpack.c.l.b16 %v664
        %v717 = vunpack.c.l.b16 %v665
        %v718 = vunpack.c.l.b16 %v666
        %v719 = vunpack.c.l.b16 %v667
        %v720 = vunpack.c.l.b16 %v668
        %v721 = vunpack.c.l.b16 %v669
        %v722 = vunpack.c.l.b16 %v670
        %v723 = vpack.c.b16 %v698, %v697
        %v724 = vpack.c.b16 %v700, %v699
        %v725 = vpack.c.b16 %v702, %v701
        %v726 = vpack.c.b16 %v704, %v703
        %v727 = vpack.c.b16 %v706, %v705
        %v728 = vpack.c.b16 %v708, %v707
        %v729 = vpack.c.b16 %v710, %v709
        %v730 = vpack.c.b16 %v712, %v711
        %v731 = vpack.c.b16 %v714, %v713
        %v732 = vpack.c.b16 %v716, %v715
        %v733 = vpack.c.b16 %v718, %v717
        %v734 = vpack.c.b16 %v720, %v719
        %v735 = vpack.c.b16 %v722, %v721
        %v742 = vunpack.c.l.b16 %v613
        %v743 = vunpack.c.l.b16 %v614
        %v744 = vunpack.c.l.b16 %v615
        %v745 = vunpack.c.l.b16 %v616
        %v746 = vunpack.c.l.b16 %v617
        %v747 = vunpack.c.l.b16 %v618
        %v748 = vpack.c.b16 %v743, %v742
        %v749 = vpack.c.b16 %v745, %v744
        %v750 = vpack.c.b16 %v747, %v746
        %v755 = vsel %vm396, %v723, 0
        %v758 = vsel %vm396, %v724, 0
        %v761 = vsel %vm396, %v725, 0
        %v764 = vsel %vm396, %v726, 0
        %v767 = vsel %vm396, %v727, 0
        %v770 = vsel %vm396, %v728, 0
        %v773 = vsel %vm396, %v729, 0
        %v776 = vsel %vm396, %v730, 0
        %v779 = vsel %vm396, %v731, 0
        %v782 = vsel %vm396, %v732, 0
        %v785 = vsel %vm396, %v733, 0
        %v788 = vsel %vm396, %v734, 0
        %v791 = vsel %vm396, %v735, 0
        %793 = vmatprep.subr.bf16.mxu0 0
        %794 = vmatpush1.bf16.msra.mxu0 %v748
        %795 = vmatprep.subr.bf16.mxu0 0
        %796 = vmatpush1.bf16.msra.mxu0 %v749
        %797 = vmatprep.subr.bf16.mxu0 0
        %798 = vmatpush1.bf16.msra.mxu0 %v750
        %799 = vmatprep.subr.bf16.mxu0 0
        %800 = vmatpush1.bf16.msra.mxu0 0
        %801 = vmatprep.subr.bf16.mxu0 0
        %802 = vmatpush1.bf16.msra.mxu0 0
        %803 = vmatprep.subr.bf16.mxu0 0
        %804 = vmatpush1.bf16.msra.mxu0 0
        %805 = vmatprep.subr.bf16.mxu0 0
        %806 = vmatpush1.bf16.msra.mxu0 0
        %807 = vmatprep.subr.bf16.mxu0 0
        %808 = vmatpush1.bf16.msra.mxu0 0
        %809 = vmatprep.subr.bf16.mxu0 0
        %810 = vmatpush1.bf16.msra.mxu0 0
        %811 = vmatprep.subr.bf16.mxu0 0
        %812 = vmatpush1.bf16.msra.mxu0 0
        %813 = vmatprep.subr.bf16.mxu0 0
        %814 = vmatpush1.bf16.msra.mxu0 0
        %815 = vmatprep.subr.bf16.mxu0 0
        %816 = vmatpush1.bf16.msra.mxu0 0
        %817 = vmatprep.subr.bf16.mxu0 0
        %818 = vmatpush1.bf16.msra.mxu0 0
        %819 = vmatprep.subr.bf16.mxu0 0
        %820 = vmatpush1.bf16.msra.mxu0 0
        %821 = vmatprep.subr.bf16.mxu0 0
        %822 = vmatpush1.bf16.msra.mxu0 0
        %823 = vmatprep.subr.bf16.mxu0 0
        %824 = vmatpush1.bf16.msra.mxu0 0
        %825 = vmatprep.mubr.bf16.mxu0 0
        %826 = vmatmul.mubr.bf16.gmra.mrb[0].mxu0 %v755
        %v827 = vpop.f32.mrb[0].mxu0
        %v828 = vadd.f32 0.0, %v827
        %v829 = vpop.f32.mrb[0].mxu0
        %v830 = vpop.f32.mrb[0].mxu0
        %v831 = vadd.f32 0.0, %v830
        %v832 = vpop.f32.mrb[0].mxu0
        %833 = vmatprep.mubr.bf16.mxu0 0
        %834 = vmatmul.mubr.bf16.gmra.mrb[0].mxu0 %v758
        %v835 = vpop.f32.mrb[0].mxu0
        %v836 = vadd.f32 0.0, %v835
        %v837 = vpop.f32.mrb[0].mxu0
        %v838 = vpop.f32.mrb[0].mxu0
        %v839 = vadd.f32 0.0, %v838
        %v840 = vpop.f32.mrb[0].mxu0
        %841 = vmatprep.mubr.bf16.mxu0 0
        %842 = vmatmul.mubr.bf16.gmra.mrb[0].mxu0 %v761
        %v843 = vpop.f32.mrb[0].mxu0
        %v844 = vadd.f32 0.0, %v843
        %v845 = vpop.f32.mrb[0].mxu0
        %v846 = vpop.f32.mrb[0].mxu0
        %v847 = vadd.f32 0.0, %v846
        %v848 = vpop.f32.mrb[0].mxu0
        %849 = vmatprep.mubr.bf16.mxu0 0
        %850 = vmatmul.mubr.bf16.gmra.mrb[0].mxu0 %v764
        %v851 = vpop.f32.mrb[0].mxu0
        %v852 = vadd.f32 0.0, %v851
        %v853 = vpop.f32.mrb[0].mxu0
        %v854 = vpop.f32.mrb[0].mxu0
        %v855 = vadd.f32 0.0, %v854
        %v856 = vpop.f32.mrb[0].mxu0
        %857 = vmatprep.mubr.bf16.mxu0 0
        %858 = vmatmul.mubr.bf16.gmra.mrb[0].mxu0 %v767
        %v859 = vpop.f32.mrb[0].mxu0
        %v860 = vadd.f32 0.0, %v859
        %v861 = vpop.f32.mrb[0].mxu0
        %v862 = vpop.f32.mrb[0].mxu0
        %v863 = vadd.f32 0.0, %v862
        %v864 = vpop.f32.mrb[0].mxu0
        %865 = vmatprep.mubr.bf16.mxu0 0
        %866 = vmatmul.mubr.bf16.gmra.mrb[0].mxu0 %v770
        %v867 = vpop.f32.mrb[0].mxu0
        %v868 = vadd.f32 0.0, %v867
        %v869 = vpop.f32.mrb[0].mxu0
        %v870 = vpop.f32.mrb[0].mxu0
        %v871 = vadd.f32 0.0, %v870
        %v872 = vpop.f32.mrb[0].mxu0
        %873 = vmatprep.mubr.bf16.mxu0 0
        %874 = vmatmul.mubr.bf16.gmra.mrb[0].mxu0 %v773
        %v875 = vpop.f32.mrb[0].mxu0
        %v876 = vadd.f32 0.0, %v875
        %v877 = vpop.f32.mrb[0].mxu0
        %v878 = vpop.f32.mrb[0].mxu0
        %v879 = vadd.f32 0.0, %v878
        %v880 = vpop.f32.mrb[0].mxu0
        %881 = vmatprep.mubr.bf16.mxu0 0
        %882 = vmatmul.mubr.bf16.gmra.mrb[0].mxu0 %v776
        %v883 = vpop.f32.mrb[0].mxu0
        %v884 = vadd.f32 0.0, %v883
        %v885 = vpop.f32.mrb[0].mxu0
        %v886 = vpop.f32.mrb[0].mxu0
        %v887 = vadd.f32 0.0, %v886
        %v888 = vpop.f32.mrb[0].mxu0
        %889 = vmatprep.mubr.bf16.mxu0 0
        %890 = vmatmul.mubr.bf16.gmra.mrb[0].mxu0 %v779
        %v891 = vpop.f32.mrb[0].mxu0
        %v892 = vadd.f32 0.0, %v891
        %v893 = vpop.f32.mrb[0].mxu0
        %v894 = vpop.f32.mrb[0].mxu0
        %v895 = vadd.f32 0.0, %v894
        %v896 = vpop.f32.mrb[0].mxu0
        %897 = vmatprep.mubr.bf16.mxu0 0
        %898 = vmatmul.mubr.bf16.gmra.mrb[0].mxu0 %v782
        %v899 = vpop.f32.mrb[0].mxu0
        %v900 = vadd.f32 0.0, %v899
        %v901 = vpop.f32.mrb[0].mxu0
        %v902 = vpop.f32.mrb[0].mxu0
        %v903 = vadd.f32 0.0, %v902
        %v904 = vpop.f32.mrb[0].mxu0
        %905 = vmatprep.mubr.bf16.mxu0 0
        %906 = vmatmul.mubr.bf16.gmra.mrb[0].mxu0 %v785
        %v907 = vpop.f32.mrb[0].mxu0
        %v908 = vadd.f32 0.0, %v907
        %v909 = vpop.f32.mrb[0].mxu0
        %v910 = vpop.f32.mrb[0].mxu0
        %v911 = vadd.f32 0.0, %v910
        %v912 = vpop.f32.mrb[0].mxu0
        %913 = vmatprep.mubr.bf16.mxu0 0
        %914 = vmatmul.mubr.bf16.gmra.mrb[0].mxu0 %v788
        %v915 = vpop.f32.mrb[0].mxu0
        %v916 = vadd.f32 0.0, %v915
        %v917 = vpop.f32.mrb[0].mxu0
        %v918 = vpop.f32.mrb[0].mxu0
        %v919 = vadd.f32 0.0, %v918
        %v920 = vpop.f32.mrb[0].mxu0
        %921 = vmatprep.mubr.bf16.mxu0 0
        %922 = vmatmul.mubr.bf16.gmra.mrb[0].mxu0 %v791
        %v923 = vpop.f32.mrb[0].mxu0
        %v924 = vadd.f32 0.0, %v923
        %v925 = vpop.f32.mrb[0].mxu0
        %v926 = vpop.f32.mrb[0].mxu0
        %v927 = vadd.f32 0.0, %v926
        %v928 = vpop.f32.mrb[0].mxu0
        %929 = vdwg.mxu0
        %v930 = vadd.f32 %v619, %v828
        %v931 = vadd.f32 %v620, %v831
        %v932 = vadd.f32 %v621, %v836
        %v933 = vadd.f32 %v622, %v839
        %v934 = vadd.f32 %v623, %v844
        %v935 = vadd.f32 %v624, %v847
        %v936 = vadd.f32 %v625, %v852
        %v937 = vadd.f32 %v626, %v855
        %v938 = vadd.f32 %v627, %v860
        %v939 = vadd.f32 %v628, %v863
        %v940 = vadd.f32 %v629, %v868
        %v941 = vadd.f32 %v630, %v871
        %v942 = vadd.f32 %v631, %v876
        %v943 = vadd.f32 %v632, %v879
        %v944 = vadd.f32 %v633, %v884
        %v945 = vadd.f32 %v634, %v887
        %v946 = vadd.f32 %v635, %v892
        %v947 = vadd.f32 %v636, %v895
        %v948 = vadd.f32 %v637, %v900
        %v949 = vadd.f32 %v638, %v903
        %v950 = vadd.f32 %v639, %v908
        %v951 = vadd.f32 %v640, %v911
        %v952 = vadd.f32 %v641, %v916
        %v953 = vadd.f32 %v642, %v919
        %v954 = vadd.f32 %v643, %v924
        %v955 = vadd.f32 %v644, %v927
        %956 = vst [vmem:[#allocation2] sm:$0xff] %v930
        %957 = vst [vmem:[#allocation2 + $0x8] sm:$0xff] %v931
        %958 = vst [vmem:[#allocation2 + $0x10] sm:$0xff] %v932
        %959 = vst [vmem:[#allocation2 + $0x18] sm:$0xff] %v933
        %960 = vst [vmem:[#allocation2 + $0x20] sm:$0xff] %v934
        %961 = vst [vmem:[#allocation2 + $0x28] sm:$0xff] %v935
        %962 = vst [vmem:[#allocation2 + $0x30] sm:$0xff] %v936
        %963 = vst [vmem:[#allocation2 + $0x38] sm:$0xff] %v937
        %964 = vst [vmem:[#allocation2 + $0x40] sm:$0xff] %v938
        %965 = vst [vmem:[#allocation2 + $0x48] sm:$0xff] %v939
        %966 = vst [vmem:[#allocation2 + $0x50] sm:$0xff] %v940
        %967 = vst [vmem:[#allocation2 + $0x58] sm:$0xff] %v941
        %968 = vst [vmem:[#allocation2 + $0x60] sm:$0xff] %v942
        %969 = vst [vmem:[#allocation2 + $0x68] sm:$0xff] %v943
        %970 = vst [vmem:[#allocation2 + $0x70] sm:$0xff] %v944
        %971 = vst [vmem:[#allocation2 + $0x78] sm:$0xff] %v945
        %972 = vst [vmem:[#allocation2 + $0x80] sm:$0xff] %v946
        %973 = vst [vmem:[#allocation2 + $0x88] sm:$0xff] %v947
        %974 = vst [vmem:[#allocation2 + $0x90] sm:$0xff] %v948
        %975 = vst [vmem:[#allocation2 + $0x98] sm:$0xff] %v949
        %976 = vst [vmem:[#allocation2 + $0xa0] sm:$0xff] %v950
        %977 = vst [vmem:[#allocation2 + $0xa8] sm:$0xff] %v951
        %978 = vst [vmem:[#allocation2 + $0xb0] sm:$0xff] %v952
        %979 = vst [vmem:[#allocation2 + $0xb8] sm:$0xff] %v953
        %980 = vst [vmem:[#allocation2 + $0xc0] sm:$0xff] %v954
        %981 = vst [vmem:[#allocation2 + $0xc8] sm:$0xff] %v955
        %v982 = vld [vmem:[#allocation2 + $0xd0] sm:$0xff]
        %v983 = vld [vmem:[#allocation2 + $0xd8] sm:$0xff]
        %v984 = vld [vmem:[%s262] sm:$0xf]
        %v985 = vld [vmem:[%s262 + $0x4] sm:$0xf]
        %v988 = vunpack.c.l.b16 %v984
        %v989 = vunpack.c.l.b16 %v985
        %v990 = vpack.c.b16 %v989, %v988
        %v992 = vsel %vm396, %v990, 0
        %994 = vmatprep.subr.bf16.mxu0 0
        %995 = vmatpush1.bf16.msra.mxu0 %v748
        %996 = vmatprep.subr.bf16.mxu0 0
        %997 = vmatpush1.bf16.msra.mxu0 %v749
        %998 = vmatprep.subr.bf16.mxu0 0
        %999 = vmatpush1.bf16.msra.mxu0 %v750
        %1000 = vmatprep.subr.bf16.mxu0 0
        %1001 = vmatpush1.bf16.msra.mxu0 0
        %1002 = vmatprep.subr.bf16.mxu0 0
        %1003 = vmatpush1.bf16.msra.mxu0 0
        %1004 = vmatprep.subr.bf16.mxu0 0
        %1005 = vmatpush1.bf16.msra.mxu0 0
        %1006 = vmatprep.subr.bf16.mxu0 0
        %1007 = vmatpush1.bf16.msra.mxu0 0
        %1008 = vmatprep.subr.bf16.mxu0 0
        %1009 = vmatpush1.bf16.msra.mxu0 0
        %1010 = vmatprep.subr.bf16.mxu0 0
        %1011 = vmatpush1.bf16.msra.mxu0 0
        %1012 = vmatprep.subr.bf16.mxu0 0
        %1013 = vmatpush1.bf16.msra.mxu0 0
        %1014 = vmatprep.subr.bf16.mxu0 0
        %1015 = vmatpush1.bf16.msra.mxu0 0
        %1016 = vmatprep.subr.bf16.mxu0 0
        %1017 = vmatpush1.bf16.msra.mxu0 0
        %1018 = vmatprep.subr.bf16.mxu0 0
        %1019 = vmatpush1.bf16.msra.mxu0 0
        %1020 = vmatprep.subr.bf16.mxu0 0
        %1021 = vmatpush1.bf16.msra.mxu0 0
        %1022 = vmatprep.subr.bf16.mxu0 0
        %1023 = vmatpush1.bf16.msra.mxu0 0
        %1024 = vmatprep.subr.bf16.mxu0 0
        %1025 = vmatpush1.bf16.msra.mxu0 0
        %1026 = vmatprep.mubr.bf16.mxu0 0
        %1027 = vmatmul.mubr.bf16.gmra.mrb[0].mxu0 %v992
        %v1028 = vpop.f32.mrb[0].mxu0
        %v1029 = vadd.f32 0.0, %v1028
        %v1030 = vpop.f32.mrb[0].mxu0
        %v1031 = vpop.f32.mrb[0].mxu0
        %v1032 = vadd.f32 0.0, %v1031
        %v1033 = vpop.f32.mrb[0].mxu0
        %1034 = vdwg.mxu0
        %v1035 = vadd.f32 %v982, %v1029
        %v1036 = vadd.f32 %v983, %v1032
        %1037 = vst [vmem:[#allocation2 + $0xd0] sm:$0xff] %v1035
        %1038 = vst [vmem:[#allocation2 + $0xd8] sm:$0xff] %v1036
        %s1039 = scalar_lea.vmem %s268, 48
        %v1040 = vld [vmem:[%s1039] sm:$0xf]
        %v1041 = vld [vmem:[%s1039 + $0x4] sm:$0xf]
        %v1042 = vld [vmem:[%s1039 + $0x8] sm:$0xf]
        %v1043 = vld [vmem:[%s1039 + $0xc] sm:$0xf]
        %v1044 = vld [vmem:[%s1039 + $0x10] sm:$0xf]
        %v1045 = vld [vmem:[%s1039 + $0x14] sm:$0xf]
        %v1046 = vld [vmem:[#allocation2] sm:$0xff]
        %v1047 = vld [vmem:[#allocation2 + $0x8] sm:$0xff]
        %v1048 = vld [vmem:[#allocation2 + $0x10] sm:$0xff]
        %v1049 = vld [vmem:[#allocation2 + $0x18] sm:$0xff]
        %v1050 = vld [vmem:[#allocation2 + $0x20] sm:$0xff]
        %v1051 = vld [vmem:[#allocation2 + $0x28] sm:$0xff]
        %v1052 = vld [vmem:[#allocation2 + $0x30] sm:$0xff]
        %v1053 = vld [vmem:[#allocation2 + $0x38] sm:$0xff]
        %v1054 = vld [vmem:[#allocation2 + $0x40] sm:$0xff]
        %v1055 = vld [vmem:[#allocation2 + $0x48] sm:$0xff]
        %v1056 = vld [vmem:[#allocation2 + $0x50] sm:$0xff]
        %v1057 = vld [vmem:[#allocation2 + $0x58] sm:$0xff]
        %v1058 = vld [vmem:[#allocation2 + $0x60] sm:$0xff]
        %v1059 = vld [vmem:[#allocation2 + $0x68] sm:$0xff]
        %v1060 = vld [vmem:[#allocation2 + $0x70] sm:$0xff]
        %v1061 = vld [vmem:[#allocation2 + $0x78] sm:$0xff]
        %v1062 = vld [vmem:[#allocation2 + $0x80] sm:$0xff]
        %v1063 = vld [vmem:[#allocation2 + $0x88] sm:$0xff]
        %v1064 = vld [vmem:[#allocation2 + $0x90] sm:$0xff]
        %v1065 = vld [vmem:[#allocation2 + $0x98] sm:$0xff]
        %v1066 = vld [vmem:[#allocation2 + $0xa0] sm:$0xff]
        %v1067 = vld [vmem:[#allocation2 + $0xa8] sm:$0xff]
        %v1068 = vld [vmem:[#allocation2 + $0xb0] sm:$0xff]
        %v1069 = vld [vmem:[#allocation2 + $0xb8] sm:$0xff]
        %v1070 = vld [vmem:[%s255 + $0x10] sm:$0xf]
        %v1071 = vld [vmem:[%s255 + $0x14] sm:$0xf]
        %v1072 = vld [vmem:[%s255 + $0x18] sm:$0xf]
        %v1073 = vld [vmem:[%s255 + $0x1c] sm:$0xf]
        %v1074 = vld [vmem:[%s255 + $0x20] sm:$0xf]
        %v1075 = vld [vmem:[%s255 + $0x24] sm:$0xf]
        %v1076 = vld [vmem:[%s255 + $0x28] sm:$0xf]
        %v1077 = vld [vmem:[%s255 + $0x2c] sm:$0xf]
        %v1078 = vld [vmem:[%s255 + $0x30] sm:$0xf]
        %v1079 = vld [vmem:[%s255 + $0x34] sm:$0xf]
        %v1080 = vld [vmem:[%s255 + $0x38] sm:$0xf]
        %v1081 = vld [vmem:[%s255 + $0x3c] sm:$0xf]
        %v1082 = vld [vmem:[%s255 + $0x40] sm:$0xf]
        %v1083 = vld [vmem:[%s255 + $0x44] sm:$0xf]
        %v1084 = vld [vmem:[%s255 + $0x48] sm:$0xf]
        %v1085 = vld [vmem:[%s255 + $0x4c] sm:$0xf]
        %v1086 = vld [vmem:[%s255 + $0x50] sm:$0xf]
        %v1087 = vld [vmem:[%s255 + $0x54] sm:$0xf]
        %v1088 = vld [vmem:[%s255 + $0x58] sm:$0xf]
        %v1089 = vld [vmem:[%s255 + $0x5c] sm:$0xf]
        %v1090 = vld [vmem:[%s255 + $0x60] sm:$0xf]
        %v1091 = vld [vmem:[%s255 + $0x64] sm:$0xf]
        %v1092 = vld [vmem:[%s255 + $0x68] sm:$0xf]
        %v1093 = vld [vmem:[%s255 + $0x6c] sm:$0xf]
        %v1118 = vunpack.c.l.b16 %v1070
        %v1119 = vunpack.c.l.b16 %v1071
        %v1120 = vunpack.c.l.b16 %v1072
        %v1121 = vunpack.c.l.b16 %v1073
        %v1122 = vunpack.c.l.b16 %v1074
        %v1123 = vunpack.c.l.b16 %v1075
        %v1124 = vunpack.c.l.b16 %v1076
        %v1125 = vunpack.c.l.b16 %v1077
        %v1126 = vunpack.c.l.b16 %v1078
        %v1127 = vunpack.c.l.b16 %v1079
        %v1128 = vunpack.c.l.b16 %v1080
        %v1129 = vunpack.c.l.b16 %v1081
        %v1130 = vunpack.c.l.b16 %v1082
        %v1131 = vunpack.c.l.b16 %v1083
        %v1132 = vunpack.c.l.b16 %v1084
        %v1133 = vunpack.c.l.b16 %v1085
        %v1134 = vunpack.c.l.b16 %v1086
        %v1135 = vunpack.c.l.b16 %v1087
        %v1136 = vunpack.c.l.b16 %v1088
        %v1137 = vunpack.c.l.b16 %v1089
        %v1138 = vunpack.c.l.b16 %v1090
        %v1139 = vunpack.c.l.b16 %v1091
        %v1140 = vunpack.c.l.b16 %v1092
        %v1141 = vunpack.c.l.b16 %v1093
        %v1142 = vpack.c.b16 %v1119, %v1118
        %v1143 = vpack.c.b16 %v1121, %v1120
        %v1144 = vpack.c.b16 %v1123, %v1122
        %v1145 = vpack.c.b16 %v1125, %v1124
        %v1146 = vpack.c.b16 %v1127, %v1126
        %v1147 = vpack.c.b16 %v1129, %v1128
        %v1148 = vpack.c.b16 %v1131, %v1130
        %v1149 = vpack.c.b16 %v1133, %v1132
        %v1150 = vpack.c.b16 %v1135, %v1134
        %v1151 = vpack.c.b16 %v1137, %v1136
        %v1152 = vpack.c.b16 %v1139, %v1138
        %v1153 = vpack.c.b16 %v1141, %v1140
        %v1160 = vunpack.c.l.b16 %v1040
        %v1161 = vunpack.c.l.b16 %v1041
        %v1162 = vunpack.c.l.b16 %v1042
        %v1163 = vunpack.c.l.b16 %v1043
        %v1164 = vunpack.c.l.b16 %v1044
        %v1165 = vunpack.c.l.b16 %v1045
        %v1166 = vpack.c.b16 %v1161, %v1160
        %v1167 = vpack.c.b16 %v1163, %v1162
        %v1168 = vpack.c.b16 %v1165, %v1164
        %v1173 = vsel %vm396, %v1142, 0
        %v1176 = vsel %vm396, %v1143, 0
        %v1179 = vsel %vm396, %v1144, 0
        %v1182 = vsel %vm396, %v1145, 0
        %v1185 = vsel %vm396, %v1146, 0
        %v1188 = vsel %vm396, %v1147, 0
        %v1191 = vsel %vm396, %v1148, 0
        %v1194 = vsel %vm396, %v1149, 0
        %v1197 = vsel %vm396, %v1150, 0
        %v1200 = vsel %vm396, %v1151, 0
        %v1203 = vsel %vm396, %v1152, 0
        %v1206 = vsel %vm396, %v1153, 0
        %1208 = vmatprep.subr.bf16.mxu0 0
        %1209 = vmatpush1.bf16.msra.mxu0 %v1166
        %1210 = vmatprep.subr.bf16.mxu0 0
        %1211 = vmatpush1.bf16.msra.mxu0 %v1167
        %1212 = vmatprep.subr.bf16.mxu0 0
        %1213 = vmatpush1.bf16.msra.mxu0 %v1168
        %1214 = vmatprep.subr.bf16.mxu0 0
        %1215 = vmatpush1.bf16.msra.mxu0 0
        %1216 = vmatprep.subr.bf16.mxu0 0
        %1217 = vmatpush1.bf16.msra.mxu0 0
        %1218 = vmatprep.subr.bf16.mxu0 0
        %1219 = vmatpush1.bf16.msra.mxu0 0
        %1220 = vmatprep.subr.bf16.mxu0 0
        %1221 = vmatpush1.bf16.msra.mxu0 0
        %1222 = vmatprep.subr.bf16.mxu0 0
        %1223 = vmatpush1.bf16.msra.mxu0 0
        %1224 = vmatprep.subr.bf16.mxu0 0
        %1225 = vmatpush1.bf16.msra.mxu0 0
        %1226 = vmatprep.subr.bf16.mxu0 0
        %1227 = vmatpush1.bf16.msra.mxu0 0
        %1228 = vmatprep.subr.bf16.mxu0 0
        %1229 = vmatpush1.bf16.msra.mxu0 0
        %1230 = vmatprep.subr.bf16.mxu0 0
        %1231 = vmatpush1.bf16.msra.mxu0 0
        %1232 = vmatprep.subr.bf16.mxu0 0
        %1233 = vmatpush1.bf16.msra.mxu0 0
        %1234 = vmatprep.subr.bf16.mxu0 0
        %1235 = vmatpush1.bf16.msra.mxu0 0
        %1236 = vmatprep.subr.bf16.mxu0 0
        %1237 = vmatpush1.bf16.msra.mxu0 0
        %1238 = vmatprep.subr.bf16.mxu0 0
        %1239 = vmatpush1.bf16.msra.mxu0 0
        %1240 = vmatprep.mubr.bf16.mxu0 0
        %1241 = vmatmul.mubr.bf16.gmra.mrb[0].mxu0 %v1173
        %v1242 = vpop.f32.mrb[0].mxu0
        %v1243 = vadd.f32 0.0, %v1242
        %v1244 = vpop.f32.mrb[0].mxu0
        %v1245 = vpop.f32.mrb[0].mxu0
        %v1246 = vadd.f32 0.0, %v1245
        %v1247 = vpop.f32.mrb[0].mxu0
        %1248 = vmatprep.mubr.bf16.mxu0 0
        %1249 = vmatmul.mubr.bf16.gmra.mrb[0].mxu0 %v1176
        %v1250 = vpop.f32.mrb[0].mxu0
        %v1251 = vadd.f32 0.0, %v1250
        %v1252 = vpop.f32.mrb[0].mxu0
        %v1253 = vpop.f32.mrb[0].mxu0
        %v1254 = vadd.f32 0.0, %v1253
        %v1255 = vpop.f32.mrb[0].mxu0
        %1256 = vmatprep.mubr.bf16.mxu0 0
        %1257 = vmatmul.mubr.bf16.gmra.mrb[0].mxu0 %v1179
        %v1258 = vpop.f32.mrb[0].mxu0
        %v1259 = vadd.f32 0.0, %v1258
        %v1260 = vpop.f32.mrb[0].mxu0
        %v1261 = vpop.f32.mrb[0].mxu0
        %v1262 = vadd.f32 0.0, %v1261
        %v1263 = vpop.f32.mrb[0].mxu0
        %1264 = vmatprep.mubr.bf16.mxu0 0
        %1265 = vmatmul.mubr.bf16.gmra.mrb[0].mxu0 %v1182
        %v1266 = vpop.f32.mrb[0].mxu0
        %v1267 = vadd.f32 0.0, %v1266
        %v1268 = vpop.f32.mrb[0].mxu0
        %v1269 = vpop.f32.mrb[0].mxu0
        %v1270 = vadd.f32 0.0, %v1269
        %v1271 = vpop.f32.mrb[0].mxu0
        %1272 = vmatprep.mubr.bf16.mxu0 0
        %1273 = vmatmul.mubr.bf16.gmra.mrb[0].mxu0 %v1185
        %v1274 = vpop.f32.mrb[0].mxu0
        %v1275 = vadd.f32 0.0, %v1274
        %v1276 = vpop.f32.mrb[0].mxu0
        %v1277 = vpop.f32.mrb[0].mxu0
        %v1278 = vadd.f32 0.0, %v1277
        %v1279 = vpop.f32.mrb[0].mxu0
        %1280 = vmatprep.mubr.bf16.mxu0 0
        %1281 = vmatmul.mubr.bf16.gmra.mrb[0].mxu0 %v1188
        %v1282 = vpop.f32.mrb[0].mxu0
        %v1283 = vadd.f32 0.0, %v1282
        %v1284 = vpop.f32.mrb[0].mxu0
        %v1285 = vpop.f32.mrb[0].mxu0
        %v1286 = vadd.f32 0.0, %v1285
        %v1287 = vpop.f32.mrb[0].mxu0
        %1288 = vmatprep.mubr.bf16.mxu0 0
        %1289 = vmatmul.mubr.bf16.gmra.mrb[0].mxu0 %v1191
        %v1290 = vpop.f32.mrb[0].mxu0
        %v1291 = vadd.f32 0.0, %v1290
        %v1292 = vpop.f32.mrb[0].mxu0
        %v1293 = vpop.f32.mrb[0].mxu0
        %v1294 = vadd.f32 0.0, %v1293
        %v1295 = vpop.f32.mrb[0].mxu0
        %1296 = vmatprep.mubr.bf16.mxu0 0
        %1297 = vmatmul.mubr.bf16.gmra.mrb[0].mxu0 %v1194
        %v1298 = vpop.f32.mrb[0].mxu0
        %v1299 = vadd.f32 0.0, %v1298
        %v1300 = vpop.f32.mrb[0].mxu0
        %v1301 = vpop.f32.mrb[0].mxu0
        %v1302 = vadd.f32 0.0, %v1301
        %v1303 = vpop.f32.mrb[0].mxu0
        %1304 = vmatprep.mubr.bf16.mxu0 0
        %1305 = vmatmul.mubr.bf16.gmra.mrb[0].mxu0 %v1197
        %v1306 = vpop.f32.mrb[0].mxu0
        %v1307 = vadd.f32 0.0, %v1306
        %v1308 = vpop.f32.mrb[0].mxu0
        %v1309 = vpop.f32.mrb[0].mxu0
        %v1310 = vadd.f32 0.0, %v1309
        %v1311 = vpop.f32.mrb[0].mxu0
        %1312 = vmatprep.mubr.bf16.mxu0 0
        %1313 = vmatmul.mubr.bf16.gmra.mrb[0].mxu0 %v1200
        %v1314 = vpop.f32.mrb[0].mxu0
        %v1315 = vadd.f32 0.0, %v1314
        %v1316 = vpop.f32.mrb[0].mxu0
        %v1317 = vpop.f32.mrb[0].mxu0
        %v1318 = vadd.f32 0.0, %v1317
        %v1319 = vpop.f32.mrb[0].mxu0
        %1320 = vmatprep.mubr.bf16.mxu0 0
        %1321 = vmatmul.mubr.bf16.gmra.mrb[0].mxu0 %v1203
        %v1322 = vpop.f32.mrb[0].mxu0
        %v1323 = vadd.f32 0.0, %v1322
        %v1324 = vpop.f32.mrb[0].mxu0
        %v1325 = vpop.f32.mrb[0].mxu0
        %v1326 = vadd.f32 0.0, %v1325
        %v1327 = vpop.f32.mrb[0].mxu0
        %1328 = vmatprep.mubr.bf16.mxu0 0
        %1329 = vmatmul.mubr.bf16.gmra.mrb[0].mxu0 %v1206
        %v1330 = vpop.f32.mrb[0].mxu0
        %v1331 = vadd.f32 0.0, %v1330
        %v1332 = vpop.f32.mrb[0].mxu0
        %v1333 = vpop.f32.mrb[0].mxu0
        %v1334 = vadd.f32 0.0, %v1333
        %v1335 = vpop.f32.mrb[0].mxu0
        %1336 = vdwg.mxu0
        %v1337 = vadd.f32 %v1046, %v1243
        %v1338 = vadd.f32 %v1047, %v1246
        %v1339 = vadd.f32 %v1048, %v1251
        %v1340 = vadd.f32 %v1049, %v1254
        %v1341 = vadd.f32 %v1050, %v1259
        %v1342 = vadd.f32 %v1051, %v1262
        %v1343 = vadd.f32 %v1052, %v1267
        %v1344 = vadd.f32 %v1053, %v1270
        %v1345 = vadd.f32 %v1054, %v1275
        %v1346 = vadd.f32 %v1055, %v1278
        %v1347 = vadd.f32 %v1056, %v1283
        %v1348 = vadd.f32 %v1057, %v1286
        %v1349 = vadd.f32 %v1058, %v1291
        %v1350 = vadd.f32 %v1059, %v1294
        %v1351 = vadd.f32 %v1060, %v1299
        %v1352 = vadd.f32 %v1061, %v1302
        %v1353 = vadd.f32 %v1062, %v1307
        %v1354 = vadd.f32 %v1063, %v1310
        %v1355 = vadd.f32 %v1064, %v1315
        %v1356 = vadd.f32 %v1065, %v1318
        %v1357 = vadd.f32 %v1066, %v1323
        %v1358 = vadd.f32 %v1067, %v1326
        %v1359 = vadd.f32 %v1068, %v1331
        %v1360 = vadd.f32 %v1069, %v1334
        %1361 = vst [vmem:[#allocation2] sm:$0xff] %v1337
        %1362 = vst [vmem:[#allocation2 + $0x8] sm:$0xff] %v1338
        %1363 = vst [vmem:[#allocation2 + $0x10] sm:$0xff] %v1339
        %1364 = vst [vmem:[#allocation2 + $0x18] sm:$0xff] %v1340
        %1365 = vst [vmem:[#allocation2 + $0x20] sm:$0xff] %v1341
        %1366 = vst [vmem:[#allocation2 + $0x28] sm:$0xff] %v1342
        %1367 = vst [vmem:[#allocation2 + $0x30] sm:$0xff] %v1343
        %1368 = vst [vmem:[#allocation2 + $0x38] sm:$0xff] %v1344
        %1369 = vst [vmem:[#allocation2 + $0x40] sm:$0xff] %v1345
        %1370 = vst [vmem:[#allocation2 + $0x48] sm:$0xff] %v1346
        %1371 = vst [vmem:[#allocation2 + $0x50] sm:$0xff] %v1347
        %1372 = vst [vmem:[#allocation2 + $0x58] sm:$0xff] %v1348
        %1373 = vst [vmem:[#allocation2 + $0x60] sm:$0xff] %v1349
        %1374 = vst [vmem:[#allocation2 + $0x68] sm:$0xff] %v1350
        %1375 = vst [vmem:[#allocation2 + $0x70] sm:$0xff] %v1351
        %1376 = vst [vmem:[#allocation2 + $0x78] sm:$0xff] %v1352
        %1377 = vst [vmem:[#allocation2 + $0x80] sm:$0xff] %v1353
        %1378 = vst [vmem:[#allocation2 + $0x88] sm:$0xff] %v1354
        %1379 = vst [vmem:[#allocation2 + $0x90] sm:$0xff] %v1355
        %1380 = vst [vmem:[#allocation2 + $0x98] sm:$0xff] %v1356
        %1381 = vst [vmem:[#allocation2 + $0xa0] sm:$0xff] %v1357
        %1382 = vst [vmem:[#allocation2 + $0xa8] sm:$0xff] %v1358
        %1383 = vst [vmem:[#allocation2 + $0xb0] sm:$0xff] %v1359
        %1384 = vst [vmem:[#allocation2 + $0xb8] sm:$0xff] %v1360
        %v1385 = vld [vmem:[#allocation2 + $0xc0] sm:$0xff]
        %v1386 = vld [vmem:[#allocation2 + $0xc8] sm:$0xff]
        %v1387 = vld [vmem:[#allocation2 + $0xd0] sm:$0xff]
        %v1388 = vld [vmem:[#allocation2 + $0xd8] sm:$0xff]
        %v1389 = vld [vmem:[%s262] sm:$0xf]
        %v1390 = vld [vmem:[%s262 + $0x4] sm:$0xf]
        %v1391 = vld [vmem:[%s262 + $0x8] sm:$0xf]
        %v1392 = vld [vmem:[%s262 + $0xc] sm:$0xf]
        %v1397 = vunpack.c.l.b16 %v1389
        %v1398 = vunpack.c.l.b16 %v1390
        %v1399 = vunpack.c.l.b16 %v1391
        %v1400 = vunpack.c.l.b16 %v1392
        %v1401 = vpack.c.b16 %v1398, %v1397
        %v1402 = vpack.c.b16 %v1400, %v1399
        %v1404 = vsel %vm396, %v1401, 0
        %v1407 = vsel %vm396, %v1402, 0
        %1409 = vmatprep.subr.bf16.mxu0 0
        %1410 = vmatpush1.bf16.msra.mxu0 %v1166
        %1411 = vmatprep.subr.bf16.mxu0 0
        %1412 = vmatpush1.bf16.msra.mxu0 %v1167
        %1413 = vmatprep.subr.bf16.mxu0 0
        %1414 = vmatpush1.bf16.msra.mxu0 %v1168
        %1415 = vmatprep.subr.bf16.mxu0 0
        %1416 = vmatpush1.bf16.msra.mxu0 0
        %1417 = vmatprep.subr.bf16.mxu0 0
        %1418 = vmatpush1.bf16.msra.mxu0 0
        %1419 = vmatprep.subr.bf16.mxu0 0
        %1420 = vmatpush1.bf16.msra.mxu0 0
        %1421 = vmatprep.subr.bf16.mxu0 0
        %1422 = vmatpush1.bf16.msra.mxu0 0
        %1423 = vmatprep.subr.bf16.mxu0 0
        %1424 = vmatpush1.bf16.msra.mxu0 0
        %1425 = vmatprep.subr.bf16.mxu0 0
        %1426 = vmatpush1.bf16.msra.mxu0 0
        %1427 = vmatprep.subr.bf16.mxu0 0
        %1428 = vmatpush1.bf16.msra.mxu0 0
        %1429 = vmatprep.subr.bf16.mxu0 0
        %1430 = vmatpush1.bf16.msra.mxu0 0
        %1431 = vmatprep.subr.bf16.mxu0 0
        %1432 = vmatpush1.bf16.msra.mxu0 0
        %1433 = vmatprep.subr.bf16.mxu0 0
        %1434 = vmatpush1.bf16.msra.mxu0 0
        %1435 = vmatprep.subr.bf16.mxu0 0
        %1436 = vmatpush1.bf16.msra.mxu0 0
        %1437 = vmatprep.subr.bf16.mxu0 0
        %1438 = vmatpush1.bf16.msra.mxu0 0
        %1439 = vmatprep.subr.bf16.mxu0 0
        %1440 = vmatpush1.bf16.msra.mxu0 0
        %1441 = vmatprep.mubr.bf16.mxu0 0
        %1442 = vmatmul.mubr.bf16.gmra.mrb[0].mxu0 %v1404
        %v1443 = vpop.f32.mrb[0].mxu0
        %v1444 = vadd.f32 0.0, %v1443
        %v1445 = vpop.f32.mrb[0].mxu0
        %v1446 = vpop.f32.mrb[0].mxu0
        %v1447 = vadd.f32 0.0, %v1446
        %v1448 = vpop.f32.mrb[0].mxu0
        %1449 = vmatprep.mubr.bf16.mxu0 0
        %1450 = vmatmul.mubr.bf16.gmra.mrb[0].mxu0 %v1407
        %v1451 = vpop.f32.mrb[0].mxu0
        %v1452 = vadd.f32 0.0, %v1451
        %v1453 = vpop.f32.mrb[0].mxu0
        %v1454 = vpop.f32.mrb[0].mxu0
        %v1455 = vadd.f32 0.0, %v1454
        %v1456 = vpop.f32.mrb[0].mxu0
        %1457 = vdwg.mxu0
        %v1458 = vadd.f32 %v1385, %v1444
        %v1459 = vadd.f32 %v1386, %v1447
        %v1460 = vadd.f32 %v1387, %v1452
        %v1461 = vadd.f32 %v1388, %v1455
        %1462 = vst [vmem:[#allocation2 + $0xc0] sm:$0xff] %v1458
        %1463 = vst [vmem:[#allocation2 + $0xc8] sm:$0xff] %v1459
        %1464 = vst [vmem:[#allocation2 + $0xd0] sm:$0xff] %v1460
        %1465 = vst [vmem:[#allocation2 + $0xd8] sm:$0xff] %v1461
        %v1466 = vld [vmem:[#allocation2] sm:$0xff]
        %v1467 = vld [vmem:[#allocation2 + $0x8] sm:$0xff]
        %v1468 = vld [vmem:[#allocation2 + $0x10] sm:$0xff]
        %v1469 = vld [vmem:[#allocation2 + $0x18] sm:$0xff]
        %v1470 = vld [vmem:[#allocation2 + $0x20] sm:$0xff]
        %v1471 = vld [vmem:[#allocation2 + $0x28] sm:$0xff]
        %v1472 = vld [vmem:[#allocation2 + $0x30] sm:$0xff]
        %v1473 = vld [vmem:[#allocation2 + $0x38] sm:$0xff]
        %v1474 = vld [vmem:[#allocation2 + $0x40] sm:$0xff]
        %v1475 = vld [vmem:[#allocation2 + $0x48] sm:$0xff]
        %v1476 = vld [vmem:[#allocation2 + $0x50] sm:$0xff]
        %v1477 = vld [vmem:[#allocation2 + $0x58] sm:$0xff]
        %v1478 = vld [vmem:[#allocation2 + $0x60] sm:$0xff]
        %v1479 = vld [vmem:[#allocation2 + $0x68] sm:$0xff]
        %v1480 = vld [vmem:[#allocation2 + $0x70] sm:$0xff]
        %v1481 = vld [vmem:[#allocation2 + $0x78] sm:$0xff]
        %v1482 = vld [vmem:[#allocation2 + $0x80] sm:$0xff]
        %v1483 = vld [vmem:[#allocation2 + $0x88] sm:$0xff]
        %v1484 = vld [vmem:[#allocation2 + $0x90] sm:$0xff]
        %v1485 = vld [vmem:[#allocation2 + $0x98] sm:$0xff]
        %v1486 = vld [vmem:[#allocation2 + $0xa0] sm:$0xff]
        %v1487 = vld [vmem:[#allocation2 + $0xa8] sm:$0xff]
        %v1488 = vld [vmem:[#allocation2 + $0xb0] sm:$0xff]
        %v1489 = vld [vmem:[#allocation2 + $0xb8] sm:$0xff]
        %v1490 = vld [vmem:[#allocation2 + $0xc0] sm:$0xff]
        %v1491 = vld [vmem:[#allocation2 + $0xc8] sm:$0xff]
        %v1492 = vld [vmem:[#allocation2 + $0xd0] sm:$0xff]
        %v1493 = vld [vmem:[#allocation2 + $0xd8] sm:$0xff]
        %v1494 = vld [vmem:[%s271] sm:$0x1]
        %v1496 = vlaneseq
        %v1497 = vshrl.u32 %v1496, 7
        %v1498 = vsub.s32 0, %v1497
        %v1499 = vrot.slane %v1494, %v1498
        %v1501 = vadd.f32 %v1466, %v1499
        %v1502 = vadd.f32 %v1467, %v1499
        %v1503 = vadd.f32 %v1468, %v1499
        %v1504 = vadd.f32 %v1469, %v1499
        %v1505 = vadd.f32 %v1470, %v1499
        %v1506 = vadd.f32 %v1471, %v1499
        %v1507 = vadd.f32 %v1472, %v1499
        %v1508 = vadd.f32 %v1473, %v1499
        %v1509 = vadd.f32 %v1474, %v1499
        %v1510 = vadd.f32 %v1475, %v1499
        %v1511 = vadd.f32 %v1476, %v1499
        %v1512 = vadd.f32 %v1477, %v1499
        %v1513 = vadd.f32 %v1478, %v1499
        %v1514 = vadd.f32 %v1479, %v1499
        %v1515 = vadd.f32 %v1480, %v1499
        %v1516 = vadd.f32 %v1481, %v1499
        %v1517 = vadd.f32 %v1482, %v1499
        %v1518 = vadd.f32 %v1483, %v1499
        %v1519 = vadd.f32 %v1484, %v1499
        %v1520 = vadd.f32 %v1485, %v1499
        %v1521 = vadd.f32 %v1486, %v1499
        %v1522 = vadd.f32 %v1487, %v1499
        %v1523 = vadd.f32 %v1488, %v1499
        %v1524 = vadd.f32 %v1489, %v1499
        %v1525 = vadd.f32 %v1490, %v1499
        %v1526 = vadd.f32 %v1491, %v1499
        %v1527 = vadd.f32 %v1492, %v1499
        %v1528 = vadd.f32 %v1493, %v1499
        %1529 = vst [vmem:[%s250] sm:$0xff] %v1501
        %1530 = vst [vmem:[%s250 + $0x8] sm:$0xff] %v1502
        %1531 = vst [vmem:[%s250 + $0x10] sm:$0xff] %v1503
        %1532 = vst [vmem:[%s250 + $0x18] sm:$0xff] %v1504
        %1533 = vst [vmem:[%s250 + $0x20] sm:$0xff] %v1505
        %1534 = vst [vmem:[%s250 + $0x28] sm:$0xff] %v1506
        %1535 = vst [vmem:[%s250 + $0x30] sm:$0xff] %v1507
        %1536 = vst [vmem:[%s250 + $0x38] sm:$0xff] %v1508
        %1537 = vst [vmem:[%s250 + $0x40] sm:$0xff] %v1509
        %1538 = vst [vmem:[%s250 + $0x48] sm:$0xff] %v1510
        %1539 = vst [vmem:[%s250 + $0x50] sm:$0xff] %v1511
        %1540 = vst [vmem:[%s250 + $0x58] sm:$0xff] %v1512
        %1541 = vst [vmem:[%s250 + $0x60] sm:$0xff] %v1513
        %1542 = vst [vmem:[%s250 + $0x68] sm:$0xff] %v1514
        %1543 = vst [vmem:[%s250 + $0x70] sm:$0xff] %v1515
        %1544 = vst [vmem:[%s250 + $0x78] sm:$0xff] %v1516
        %1545 = vst [vmem:[%s250 + $0x80] sm:$0xff] %v1517
        %1546 = vst [vmem:[%s250 + $0x88] sm:$0xff] %v1518
        %1547 = vst [vmem:[%s250 + $0x90] sm:$0xff] %v1519
        %1548 = vst [vmem:[%s250 + $0x98] sm:$0xff] %v1520
        %1549 = vst [vmem:[%s250 + $0xa0] sm:$0xff] %v1521
        %1550 = vst [vmem:[%s250 + $0xa8] sm:$0xff] %v1522
        %1551 = vst [vmem:[%s250 + $0xb0] sm:$0xff] %v1523
        %1552 = vst [vmem:[%s250 + $0xb8] sm:$0xff] %v1524
        %1553 = vst [vmem:[%s250 + $0xc0] sm:$0xff] %v1525
        %1554 = vst [vmem:[%s250 + $0xc8] sm:$0xff] %v1526
        %1555 = vst [vmem:[%s250 + $0xd0] sm:$0xff] %v1527
        %1556 = vst [vmem:[%s250 + $0xd8] sm:$0xff] %v1528
        %s1557 = sand.u32 %s146, 1
        %s1558 = scalar_lea.sflag [#allocation4], %s1557
        %s1559 = sand.u32 %s146, 1
        %s1560 = smul.addr %s1559, 224
        %s1561 = scalar_lea.vmem [#allocation3], %s1560
        // Predicated region
        $region37: #{tpu_custom_call.1} parent=35 // pred_check
          %p1562 = pneg %p156
        $region38: #{tpu_custom_call.1} parent=35 // pred_check_branch
          %1564 = sbr.rel (%p1562) target = $region40
        $region39: #{tpu_custom_call.1} parent=35 // pred_region
          %s1565 = smul.u32 28, %s22
          %s1567 = ssub.s32 3584, 3584
          %1568 = vsyncadd %s1558, %s1567
          %s1569 = sadd.s32 %s23, %s1565
          %s1570 = smul.addr %s1569, 128
          %s1571 = scalar_lea.hbm %s4, %s1570
          %s1572 = sshll.u32 %s1561, 4
          %s1573 = int_to_ptr.vmem [resolvable:$true] %s1572
          %1578 = dma.vmem_to_hbm [thread:$0]  %s1573, 3584, %s1571, %s1558, 128, 128, 8
        $region40: #{tpu_custom_call.1} parent=35 // pred_fallthru
          _
      $region36: #{tpu_custom_call.1} parent=5 // pred_fallthru
        _
      %p1579 = scmp.le.s32.totalorder 2, %s13
      // Predicated region
      $region41: #{tpu_custom_call.1} parent=5 // pred_check
        %p1580 = pneg %p1579
      $region42: #{tpu_custom_call.1} parent=5 // pred_check_branch
        %1582 = sbr.rel (%p1580) target = $region44
      $region43: #{tpu_custom_call.1} parent=5 // pred_region
        %s1583 = ssub.s32 %s13, 2
        // Predicated region
        $region45: #{tpu_custom_call.1} parent=43 // pred_check
          %p1584 = pneg %p162
        $region46: #{tpu_custom_call.1} parent=43 // pred_check_branch
          %1586 = sbr.rel (%p1584) target = $region48
        $region47: #{tpu_custom_call.1} parent=43 // pred_region
          %s1587 = sand.u32 %s147, 1
          %s1588 = scalar_lea.sflag [#allocation4], %s1587
          %s1589 = sand.u32 %s147, 1
          %s1590 = smul.addr %s1589, 224
          %s1591 = scalar_lea.vmem [#allocation3], %s1590
          %1592 = dma.done %s1588, 3584
        $region48: #{tpu_custom_call.1} parent=43 // pred_fallthru
          _
      $region44: #{tpu_custom_call.1} parent=5 // pred_fallthru
        _
    $region6: #{tpu_custom_call.1} parent=1 // loop_footer
      %s17 = sadd.s32 1, %s13
    $region7: #{tpu_custom_call.1} parent=1 // loop_footer_branch
      %12 = sbr.rel target = $region3
    $region8: #{tpu_custom_call.1} parent=1 // loop_exit
      _
    %1593 = vsyncpa [#allocation4], 1
    %s1594 = scalar_lea.sflag [#allocation4], 1
    %1595 = vsyncpa %s1594, 1

</llo_original>
